<compile_context>
chip_gen: v5e
topology: v5e:2x2
jax: 0.10.0
libtpu: 0.0.40
codegen_flags: <defaults>
</compile_context>

<pallas_src>
import jax
import jax.numpy as jnp
from jax.experimental import pallas as pl
from jax.experimental.pallas import tpu as pltpu

BATCH = 100          # hard-coded `batch_size` global in the PyTorch module
IN_H = IN_W = 28     # implied by MaxPool2d(2) -> view(batch, 196)
POOL_DIM = 196       # 14 * 14  (== output_dim)
POOL_PAD = 256       # lane-dense padded width for x2 (K) and x_hat (N)
HIDDEN = 200         # hidden_dim
LATENT = 100         # latent_dim
ZDIM = 2             # mean/logvar width


def _pick_b_block():
    """One grid step per TensorCore: 64-row blocks on v7x (2 TCs), a single
    128-row block elsewhere (v5e/v6e have one TC; extra steps = pure overhead)."""
    try:
        kind = jax.devices()[0].device_kind.lower()
    except Exception:
        kind = ""
    return 64 if "v7" in kind else 128


B_BLOCK = _pick_b_block()


def _vae_kernel(x2_ref, eps_ref,
                w1_ref, b1_ref, w2_ref, b2_ref, wml_ref, bml_ref,
                wd1_ref, bd1_ref, wd2_ref, bd2_ref, wd3_ref, bd3_ref,
                xhat_ref, ml_ref):
    def linear_bf16(x_bf16, w_ref, b_ref):
        # bf16 MXU matmul with f32 accumulation; bias add in f32.
        return jnp.dot(x_bf16, w_ref[...],
                       preferred_element_type=jnp.float32) + b_ref[...]

    # --- encoder -------------------------------------------------------------
    x2 = x2_ref[...]                                             # (Bb, 256) bf16
    h = jax.nn.relu(linear_bf16(x2, w1_ref, b1_ref))             # (Bb, 200) f32
    h = jax.nn.relu(linear_bf16(h.astype(jnp.bfloat16), w2_ref, b2_ref))  # (Bb, 100)

    # fused mean|logvar projection: single (100, 4) matmul
    ml = linear_bf16(h.astype(jnp.bfloat16), wml_ref, bml_ref)   # (Bb, 4)
    ml_ref[...] = ml
    mean = ml[:, 0:ZDIM]                                         # (Bb, 2)
    logvar = ml[:, ZDIM:2 * ZDIM]                                # (Bb, 2)

    # --- reparameterization (as in the PyTorch forward: mean + logvar * eps) --
    z = mean + logvar * eps_ref[...]                             # (Bb, 2) f32

    # --- decoder -------------------------------------------------------------
    # K=2 first layer done on the VPU as two broadcast FMAs (skips MXU
    # fill/drain latency on the serial chain); wd1 stays f32.
    wd1 = wd1_ref[...]                                           # (2, 100) f32
    d = z[:, 0:1] * wd1[0:1, :] + z[:, 1:2] * wd1[1:2, :] + bd1_ref[...]
    d = jax.nn.relu(d)                                           # (Bb, 100)

    d = jax.nn.relu(linear_bf16(d.astype(jnp.bfloat16), wd2_ref, bd2_ref))  # (Bb, 200)
    logits = linear_bf16(d.astype(jnp.bfloat16), wd3_ref, bd3_ref)          # (Bb, 256)

    # sigmoid via EUP exp + approximate reciprocal (EUP slot, not VALU divide)
    xhat_ref[...] = pl.reciprocal(1.0 + jnp.exp(-logits), approx=True)


def _batch_spec(feat):
    # tiled over the batch grid axis
    return pl.BlockSpec((B_BLOCK, feat), lambda i: (i, 0))


def _weight_spec(shape):
    # weights/biases: full array, resident (same block for every grid step)
    return pl.BlockSpec(shape, lambda i: (0, 0))


@jax.jit
def vae_forward(x, eps, params):
    """x: (B, 1, 28, 28) NCHW float32; eps: (B, 2) float32."""
    B = x.shape[0]

    # MaxPool2d(2) + view(B, 196), fused in the wrapper (channel dim is 1).
    x2 = x.reshape(B, 14, 2, 14, 2).max(axis=(2, 4)).reshape(B, POOL_DIM)  # f32

    padded_b = pl.cdiv(B, B_BLOCK) * B_BLOCK
    pad_b = padded_b - B

    # Kernel input: batch rows padded to the grid, K lanes zero-padded
    # 196 -> 256 (matches zero-padded w1 rows), cast to bf16 (half the DMA).
    x2_k = jnp.pad(x2, ((0, pad_b), (0, POOL_PAD - POOL_DIM))).astype(jnp.bfloat16)
    eps_p = eps if eps.shape[0] == padded_b else jnp.pad(
        eps, ((0, padded_b - eps.shape[0]), (0, 0)))

    grid = (padded_b // B_BLOCK,)

    inputs = (x2_k, eps_p) + tuple(params)
    in_specs = [_batch_spec(POOL_PAD), _batch_spec(ZDIM)]
    in_specs += [_weight_spec(p.shape) for p in params]

    out_shapes = (
        jax.ShapeDtypeStruct((padded_b, POOL_PAD), jnp.float32),   # x_hat (lane-dense)
        jax.ShapeDtypeStruct((padded_b, 2 * ZDIM), jnp.float32),   # mean|logvar
    )
    out_specs = [_batch_spec(POOL_PAD), _batch_spec(2 * ZDIM)]

    x_hat_p, ml_p = pl.pallas_call(
        _vae_kernel,
        out_shape=out_shapes,
        grid=grid,
        in_specs=in_specs,
        out_specs=out_specs,
        compiler_params=pltpu.CompilerParams(
            dimension_semantics=("parallel",)),
    )(*inputs)

    x_hat = x_hat_p[:B, :POOL_DIM]
    mean = ml_p[:B, :ZDIM]
    logvar = ml_p[:B, ZDIM:]
    return x2, x_hat, mean, logvar


def init_params(key):
    """Deterministic PyTorch-style Linear init: U(-1/sqrt(fan_in), +1/sqrt(fan_in)).

    Weights returned pre-transposed as (in, out); MXU weights in bfloat16,
    the tiny (2, 100) decoder-first weight kept f32 (used on the VPU).
    mean_layer and logvar_layer are fused column-wise into one (100, 4) head.
    w1 rows are zero-padded 196 -> 256 (matches padded x2 lanes); wd3 / bd3
    are zero-padded 196 -> 256 output lanes (sliced off in the wrapper).
    Order matches the kernel argument order.
    """
    dims = [
        (POOL_DIM, HIDDEN),   # encoder Linear(196, 200)
        (HIDDEN, LATENT),     # encoder Linear(200, 100)
        (LATENT, ZDIM),       # mean_layer
        (LATENT, ZDIM),       # logvar_layer
        (ZDIM, LATENT),       # decoder Linear(2, 100)
        (LATENT, HIDDEN),     # decoder Linear(100, 200)
        (HIDDEN, POOL_DIM),   # decoder Linear(200, 196)
    ]
    keys = jax.random.split(key, 2 * len(dims))
    raw = []
    for idx, (fan_in, fan_out) in enumerate(dims):
        bound = float(fan_in) ** -0.5
        w = jax.random.uniform(keys[2 * idx], (fan_in, fan_out),
                               minval=-bound, maxval=bound, dtype=jnp.float32)
        b = jax.random.uniform(keys[2 * idx + 1], (1, fan_out),
                               minval=-bound, maxval=bound, dtype=jnp.float32)
        raw.append((w, b))

    (w1, b1), (w2, b2), (wm, bm), (wv, bv), (wd1, bd1), (wd2, bd2), (wd3, bd3) = raw

    # fuse mean_layer | logvar_layer into one projection
    wml = jnp.concatenate([wm, wv], axis=1)      # (100, 4)
    bml = jnp.concatenate([bm, bv], axis=1)      # (1, 4)

    # pad encoder K dim 196 -> 256 with zero rows
    w1_p = jnp.pad(w1, ((0, POOL_PAD - POOL_DIM), (0, 0)))
    # lane-pad decoder output 196 -> 256 with zero columns / zero bias
    wd3_p = jnp.pad(wd3, ((0, 0), (0, POOL_PAD - POOL_DIM)))
    bd3_p = jnp.pad(bd3, ((0, 0), (0, POOL_PAD - POOL_DIM)))

    params = (
        w1_p.astype(jnp.bfloat16), b1,
        w2.astype(jnp.bfloat16), b2,
        wml.astype(jnp.bfloat16), bml,
        wd1, bd1,                                # f32: used on the VPU
        wd2.astype(jnp.bfloat16), bd2,
        wd3_p.astype(jnp.bfloat16), bd3_p,
    )
    return params


if __name__ == "__main__":
    key = jax.random.PRNGKey(0)
    k_x, k_eps, k_p = jax.random.split(key, 3)
    x = jax.random.normal(k_x, (BATCH, 1, IN_H, IN_W), dtype=jnp.float32)
    # torch.randn_like(var) -> random normal supplied as an explicit input
    eps = jax.random.normal(k_eps, (BATCH, ZDIM), dtype=jnp.float32)
    params = init_params(k_p)

    x2, x_hat, mean, logvar = vae_forward(x, eps, params)
    jax.block_until_ready((x2, x_hat, mean, logvar))

    assert x2.shape == (BATCH, POOL_DIM)
    assert x_hat.shape == (BATCH, POOL_DIM)
    assert mean.shape == (BATCH, ZDIM)
    assert logvar.shape == (BATCH, ZDIM)
    assert bool(jnp.all(jnp.isfinite(x_hat)))
    assert bool(jnp.all((x_hat >= 0.0) & (x_hat <= 1.0)))
    print("KERNEL_OK")
</pallas_src>

<mosaic_0001>
module attributes {stable_mosaic.version = 11 : i64} {
  func.func @_vae_kernel(%arg0: i32, %arg1: memref<128x256xbf16, #tpu.memory_space<vmem>>, %arg2: memref<128x2xf32, #tpu.memory_space<vmem>>, %arg3: memref<256x200xbf16, #tpu.memory_space<vmem>>, %arg4: memref<1x200xf32, #tpu.memory_space<vmem>>, %arg5: memref<200x100xbf16, #tpu.memory_space<vmem>>, %arg6: memref<1x100xf32, #tpu.memory_space<vmem>>, %arg7: memref<100x4xbf16, #tpu.memory_space<vmem>>, %arg8: memref<1x4xf32, #tpu.memory_space<vmem>>, %arg9: memref<2x100xf32, #tpu.memory_space<vmem>>, %arg10: memref<1x100xf32, #tpu.memory_space<vmem>>, %arg11: memref<100x200xbf16, #tpu.memory_space<vmem>>, %arg12: memref<1x200xf32, #tpu.memory_space<vmem>>, %arg13: memref<200x256xbf16, #tpu.memory_space<vmem>>, %arg14: memref<1x256xf32, #tpu.memory_space<vmem>>, %arg15: memref<128x256xf32, #tpu.memory_space<vmem>>, %arg16: memref<128x4xf32, #tpu.memory_space<vmem>>) attributes {dimension_semantics = [#tpu.dimension_semantics<parallel>], iteration_bounds = array<i64: 1>, scalar_prefetch = 0 : i64, scratch_operands = 0 : i64, tpu.core_type = #tpu.core_type<tc>, window_params = [{transform_indices = @transform_0, window_bounds = array<i64: 128, 256>}, {transform_indices = @transform_1, window_bounds = array<i64: 128, 2>}, {pipeline_mode = #tpu.pipeline_mode<synchronous>, transform_indices = @transform_2, window_bounds = array<i64: 256, 200>}, {pipeline_mode = #tpu.pipeline_mode<synchronous>, transform_indices = @transform_3, window_bounds = array<i64: 1, 200>}, {pipeline_mode = #tpu.pipeline_mode<synchronous>, transform_indices = @transform_4, window_bounds = array<i64: 200, 100>}, {pipeline_mode = #tpu.pipeline_mode<synchronous>, transform_indices = @transform_5, window_bounds = array<i64: 1, 100>}, {pipeline_mode = #tpu.pipeline_mode<synchronous>, transform_indices = @transform_6, window_bounds = array<i64: 100, 4>}, {pipeline_mode = #tpu.pipeline_mode<synchronous>, transform_indices = @transform_7, window_bounds = array<i64: 1, 4>}, {pipeline_mode = #tpu.pipeline_mode<synchronous>, transform_indices = @transform_8, window_bounds = array<i64: 2, 100>}, {pipeline_mode = #tpu.pipeline_mode<synchronous>, transform_indices = @transform_9, window_bounds = array<i64: 1, 100>}, {pipeline_mode = #tpu.pipeline_mode<synchronous>, transform_indices = @transform_10, window_bounds = array<i64: 100, 200>}, {pipeline_mode = #tpu.pipeline_mode<synchronous>, transform_indices = @transform_11, window_bounds = array<i64: 1, 200>}, {pipeline_mode = #tpu.pipeline_mode<synchronous>, transform_indices = @transform_12, window_bounds = array<i64: 200, 256>}, {pipeline_mode = #tpu.pipeline_mode<synchronous>, transform_indices = @transform_13, window_bounds = array<i64: 1, 256>}, {transform_indices = @transform_14, window_bounds = array<i64: 128, 256>}, {transform_indices = @transform_15, window_bounds = array<i64: 128, 4>}]} {
    %c0 = arith.constant 0 : index
    %c0_0 = arith.constant 0 : index
    %0 = vector.load %arg1[%c0, %c0_0] : memref<128x256xbf16, #tpu.memory_space<vmem>>, vector<128x256xbf16>
    %c0_1 = arith.constant 0 : index
    %c0_2 = arith.constant 0 : index
    %1 = vector.load %arg3[%c0_1, %c0_2] : memref<256x200xbf16, #tpu.memory_space<vmem>>, vector<256x200xbf16>
    %cst = arith.constant dense<0.000000e+00> : vector<128x200xf32>
    %2 = tpu.matmul %0, %1, %cst {dimension_numbers = #tpu.dot_dimension_numbers<[1], [0], [0], [1], [0, 0, 1, 1], [], []>} : vector<128x256xbf16>, vector<256x200xbf16>, vector<128x200xf32> -> vector<128x200xf32>
    %c0_3 = arith.constant 0 : index
    %c0_4 = arith.constant 0 : index
    %3 = vector.load %arg4[%c0_3, %c0_4] : memref<1x200xf32, #tpu.memory_space<vmem>>, vector<1x200xf32>
    %4 = vector.broadcast %3 : vector<1x200xf32> to vector<128x200xf32>
    %5 = arith.addf %2, %4 : vector<128x200xf32>
    %cst_5 = arith.constant 0.000000e+00 : f32
    %6 = vector.broadcast %cst_5 : f32 to vector<128x200xf32>
    %7 = arith.maximumf %5, %6 : vector<128x200xf32>
    %8 = arith.truncf %7 : vector<128x200xf32> to vector<128x200xbf16>
    %c0_6 = arith.constant 0 : index
    %c0_7 = arith.constant 0 : index
    %9 = vector.load %arg5[%c0_6, %c0_7] : memref<200x100xbf16, #tpu.memory_space<vmem>>, vector<200x100xbf16>
    %cst_8 = arith.constant dense<0.000000e+00> : vector<128x100xf32>
    %10 = tpu.matmul %8, %9, %cst_8 {dimension_numbers = #tpu.dot_dimension_numbers<[1], [0], [0], [1], [0, 0, 1, 1], [], []>} : vector<128x200xbf16>, vector<200x100xbf16>, vector<128x100xf32> -> vector<128x100xf32>
    %c0_9 = arith.constant 0 : index
    %c0_10 = arith.constant 0 : index
    %11 = vector.load %arg6[%c0_9, %c0_10] : memref<1x100xf32, #tpu.memory_space<vmem>>, vector<1x100xf32>
    %12 = vector.broadcast %11 : vector<1x100xf32> to vector<128x100xf32>
    %13 = arith.addf %10, %12 : vector<128x100xf32>
    %cst_11 = arith.constant 0.000000e+00 : f32
    %14 = vector.broadcast %cst_11 : f32 to vector<128x100xf32>
    %15 = arith.maximumf %13, %14 : vector<128x100xf32>
    %16 = arith.truncf %15 : vector<128x100xf32> to vector<128x100xbf16>
    %c0_12 = arith.constant 0 : index
    %c0_13 = arith.constant 0 : index
    %17 = vector.load %arg7[%c0_12, %c0_13] : memref<100x4xbf16, #tpu.memory_space<vmem>>, vector<100x4xbf16>
    %cst_14 = arith.constant dense<0.000000e+00> : vector<128x4xf32>
    %18 = tpu.matmul %16, %17, %cst_14 {dimension_numbers = #tpu.dot_dimension_numbers<[1], [0], [0], [1], [0, 0, 1, 1], [], []>} : vector<128x100xbf16>, vector<100x4xbf16>, vector<128x4xf32> -> vector<128x4xf32>
    %c0_15 = arith.constant 0 : index
    %c0_16 = arith.constant 0 : index
    %19 = vector.load %arg8[%c0_15, %c0_16] : memref<1x4xf32, #tpu.memory_space<vmem>>, vector<1x4xf32>
    %20 = vector.broadcast %19 : vector<1x4xf32> to vector<128x4xf32>
    %21 = arith.addf %18, %20 : vector<128x4xf32>
    %c0_17 = arith.constant 0 : index
    %c0_18 = arith.constant 0 : index
    %22 = vector.load %arg16[%c0_17, %c0_18] : memref<128x4xf32, #tpu.memory_space<vmem>>, vector<128x4xf32>
    tpu.vector_store %arg16[%c0_17, %c0_18], %21 {strides = array<i32>} : memref<128x4xf32, #tpu.memory_space<vmem>>, vector<128x4xf32>,
    %23 = vector.extract_strided_slice %21 {offsets = [0, 0], sizes = [128, 2], strides = [1, 1]} : vector<128x4xf32> to vector<128x2xf32>
    %24 = vector.extract_strided_slice %21 {offsets = [0, 2], sizes = [128, 2], strides = [1, 1]} : vector<128x4xf32> to vector<128x2xf32>
    %c0_19 = arith.constant 0 : index
    %c0_20 = arith.constant 0 : index
    %25 = vector.load %arg2[%c0_19, %c0_20] : memref<128x2xf32, #tpu.memory_space<vmem>>, vector<128x2xf32>
    %26 = arith.mulf %24, %25 : vector<128x2xf32>
    %27 = arith.addf %23, %26 : vector<128x2xf32>
    %c0_21 = arith.constant 0 : index
    %c0_22 = arith.constant 0 : index
    %28 = vector.load %arg9[%c0_21, %c0_22] : memref<2x100xf32, #tpu.memory_space<vmem>>, vector<2x100xf32>
    %29 = vector.extract_strided_slice %27 {offsets = [0, 0], sizes = [128, 1], strides = [1, 1]} : vector<128x2xf32> to vector<128x1xf32>
    %30 = vector.extract_strided_slice %28 {offsets = [0, 0], sizes = [1, 100], strides = [1, 1]} : vector<2x100xf32> to vector<1x100xf32>
    %31 = vector.broadcast %29 : vector<128x1xf32> to vector<128x100xf32>
    %32 = vector.broadcast %30 : vector<1x100xf32> to vector<128x100xf32>
    %33 = arith.mulf %31, %32 : vector<128x100xf32>
    %34 = vector.extract_strided_slice %27 {offsets = [0, 1], sizes = [128, 1], strides = [1, 1]} : vector<128x2xf32> to vector<128x1xf32>
    %35 = vector.extract_strided_slice %28 {offsets = [1, 0], sizes = [1, 100], strides = [1, 1]} : vector<2x100xf32> to vector<1x100xf32>
    %36 = vector.broadcast %34 : vector<128x1xf32> to vector<128x100xf32>
    %37 = vector.broadcast %35 : vector<1x100xf32> to vector<128x100xf32>
    %38 = arith.mulf %36, %37 : vector<128x100xf32>
    %39 = arith.addf %33, %38 : vector<128x100xf32>
    %c0_23 = arith.constant 0 : index
    %c0_24 = arith.constant 0 : index
    %40 = vector.load %arg10[%c0_23, %c0_24] : memref<1x100xf32, #tpu.memory_space<vmem>>, vector<1x100xf32>
    %41 = vector.broadcast %40 : vector<1x100xf32> to vector<128x100xf32>
    %42 = arith.addf %39, %41 : vector<128x100xf32>
    %cst_25 = arith.constant 0.000000e+00 : f32
    %43 = vector.broadcast %cst_25 : f32 to vector<128x100xf32>
    %44 = arith.maximumf %42, %43 : vector<128x100xf32>
    %45 = arith.truncf %44 : vector<128x100xf32> to vector<128x100xbf16>
    %c0_26 = arith.constant 0 : index
    %c0_27 = arith.constant 0 : index
    %46 = vector.load %arg11[%c0_26, %c0_27] : memref<100x200xbf16, #tpu.memory_space<vmem>>, vector<100x200xbf16>
    %cst_28 = arith.constant dense<0.000000e+00> : vector<128x200xf32>
    %47 = tpu.matmul %45, %46, %cst_28 {dimension_numbers = #tpu.dot_dimension_numbers<[1], [0], [0], [1], [0, 0, 1, 1], [], []>} : vector<128x100xbf16>, vector<100x200xbf16>, vector<128x200xf32> -> vector<128x200xf32>
    %c0_29 = arith.constant 0 : index
    %c0_30 = arith.constant 0 : index
    %48 = vector.load %arg12[%c0_29, %c0_30] : memref<1x200xf32, #tpu.memory_space<vmem>>, vector<1x200xf32>
    %49 = vector.broadcast %48 : vector<1x200xf32> to vector<128x200xf32>
    %50 = arith.addf %47, %49 : vector<128x200xf32>
    %cst_31 = arith.constant 0.000000e+00 : f32
    %51 = vector.broadcast %cst_31 : f32 to vector<128x200xf32>
    %52 = arith.maximumf %50, %51 : vector<128x200xf32>
    %53 = arith.truncf %52 : vector<128x200xf32> to vector<128x200xbf16>
    %c0_32 = arith.constant 0 : index
    %c0_33 = arith.constant 0 : index
    %54 = vector.load %arg13[%c0_32, %c0_33] : memref<200x256xbf16, #tpu.memory_space<vmem>>, vector<200x256xbf16>
    %cst_34 = arith.constant dense<0.000000e+00> : vector<128x256xf32>
    %55 = tpu.matmul %53, %54, %cst_34 {dimension_numbers = #tpu.dot_dimension_numbers<[1], [0], [0], [1], [0, 0, 1, 1], [], []>} : vector<128x200xbf16>, vector<200x256xbf16>, vector<128x256xf32> -> vector<128x256xf32>
    %c0_35 = arith.constant 0 : index
    %c0_36 = arith.constant 0 : index
    %56 = vector.load %arg14[%c0_35, %c0_36] : memref<1x256xf32, #tpu.memory_space<vmem>>, vector<1x256xf32>
    %57 = vector.broadcast %56 : vector<1x256xf32> to vector<128x256xf32>
    %58 = arith.addf %55, %57 : vector<128x256xf32>
    %cst_37 = arith.constant 0.000000e+00 : f32
    %59 = vector.broadcast %cst_37 : f32 to vector<128x256xf32>
    %60 = arith.subf %59, %58 : vector<128x256xf32>
    %61 = math.exp %60 : vector<128x256xf32>
    %cst_38 = arith.constant 1.000000e+00 : f32
    %62 = vector.broadcast %cst_38 : f32 to vector<128x256xf32>
    %63 = arith.addf %62, %61 : vector<128x256xf32>
    %64 = tpu.reciprocal %63 {approx = true} : vector<128x256xf32> -> vector<128x256xf32>
    %c0_39 = arith.constant 0 : index
    %c0_40 = arith.constant 0 : index
    %65 = vector.load %arg15[%c0_39, %c0_40] : memref<128x256xf32, #tpu.memory_space<vmem>>, vector<128x256xf32>
    tpu.vector_store %arg15[%c0_39, %c0_40], %64 {strides = array<i32>} : memref<128x256xf32, #tpu.memory_space<vmem>>, vector<128x256xf32>,
    return
  }
  func.func @transform_0(%arg0: i32) -> (i32, i32) {
    %c0_i32 = arith.constant 0 : i32
    %c0_i32_0 = arith.constant 0 : i32
    return %arg0, %c0_i32 : i32, i32
  }
  func.func @transform_1(%arg0: i32) -> (i32, i32) {
    %c0_i32 = arith.constant 0 : i32
    %c0_i32_0 = arith.constant 0 : i32
    return %arg0, %c0_i32 : i32, i32
  }
  func.func @transform_2(%arg0: i32) -> (i32, i32) {
    %c0_i32 = arith.constant 0 : i32
    %c0_i32_0 = arith.constant 0 : i32
    %c0_i32_1 = arith.constant 0 : i32
    return %c0_i32, %c0_i32_0 : i32, i32
  }
  func.func @transform_3(%arg0: i32) -> (i32, i32) {
    %c0_i32 = arith.constant 0 : i32
    %c0_i32_0 = arith.constant 0 : i32
    %c0_i32_1 = arith.constant 0 : i32
    return %c0_i32, %c0_i32_0 : i32, i32
  }
  func.func @transform_4(%arg0: i32) -> (i32, i32) {
    %c0_i32 = arith.constant 0 : i32
    %c0_i32_0 = arith.constant 0 : i32
    %c0_i32_1 = arith.constant 0 : i32
    return %c0_i32, %c0_i32_0 : i32, i32
  }
  func.func @transform_5(%arg0: i32) -> (i32, i32) {
    %c0_i32 = arith.constant 0 : i32
    %c0_i32_0 = arith.constant 0 : i32
    %c0_i32_1 = arith.constant 0 : i32
    return %c0_i32, %c0_i32_0 : i32, i32
  }
  func.func @transform_6(%arg0: i32) -> (i32, i32) {
    %c0_i32 = arith.constant 0 : i32
    %c0_i32_0 = arith.constant 0 : i32
    %c0_i32_1 = arith.constant 0 : i32
    return %c0_i32, %c0_i32_0 : i32, i32
  }
  func.func @transform_7(%arg0: i32) -> (i32, i32) {
    %c0_i32 = arith.constant 0 : i32
    %c0_i32_0 = arith.constant 0 : i32
    %c0_i32_1 = arith.constant 0 : i32
    return %c0_i32, %c0_i32_0 : i32, i32
  }
  func.func @transform_8(%arg0: i32) -> (i32, i32) {
    %c0_i32 = arith.constant 0 : i32
    %c0_i32_0 = arith.constant 0 : i32
    %c0_i32_1 = arith.constant 0 : i32
    return %c0_i32, %c0_i32_0 : i32, i32
  }
  func.func @transform_9(%arg0: i32) -> (i32, i32) {
    %c0_i32 = arith.constant 0 : i32
    %c0_i32_0 = arith.constant 0 : i32
    %c0_i32_1 = arith.constant 0 : i32
    return %c0_i32, %c0_i32_0 : i32, i32
  }
  func.func @transform_10(%arg0: i32) -> (i32, i32) {
    %c0_i32 = arith.constant 0 : i32
    %c0_i32_0 = arith.constant 0 : i32
    %c0_i32_1 = arith.constant 0 : i32
    return %c0_i32, %c0_i32_0 : i32, i32
  }
  func.func @transform_11(%arg0: i32) -> (i32, i32) {
    %c0_i32 = arith.constant 0 : i32
    %c0_i32_0 = arith.constant 0 : i32
    %c0_i32_1 = arith.constant 0 : i32
    return %c0_i32, %c0_i32_0 : i32, i32
  }
  func.func @transform_12(%arg0: i32) -> (i32, i32) {
    %c0_i32 = arith.constant 0 : i32
    %c0_i32_0 = arith.constant 0 : i32
    %c0_i32_1 = arith.constant 0 : i32
    return %c0_i32, %c0_i32_0 : i32, i32
  }
  func.func @transform_13(%arg0: i32) -> (i32, i32) {
    %c0_i32 = arith.constant 0 : i32
    %c0_i32_0 = arith.constant 0 : i32
    %c0_i32_1 = arith.constant 0 : i32
    return %c0_i32, %c0_i32_0 : i32, i32
  }
  func.func @transform_14(%arg0: i32) -> (i32, i32) {
    %c0_i32 = arith.constant 0 : i32
    %c0_i32_0 = arith.constant 0 : i32
    return %arg0, %c0_i32 : i32, i32
  }
  func.func @transform_15(%arg0: i32) -> (i32, i32) {
    %c0_i32 = arith.constant 0 : i32
    %c0_i32_0 = arith.constant 0 : i32
    return %arg0, %c0_i32 : i32, i32
  }
}

</mosaic_0001>

<llo_original>
// kernel: vae_forward.1
$region0: #{vae_forward.1}
  #allocation0 [shape = 'u32[]', space=smem, size = 0x4, offset = 0x4, fixed_abs, tag = 'smem constant byte address 0x4 - core index']
  #allocation1 [shape = 'u32[72,128]{1,0:T(1,128)}', space=vmem, size = 0x9000, scoped, tag = 'internal scratch']
  %s0 = inlined_call_operand.vmem [shape: bf16[128,256], index: 0, kind: input, shape index: {}]
  %s1 = inlined_call_operand.vmem [shape: f32[128,2], index: 1, kind: input, shape index: {}]
  %s2 = inlined_call_operand.vmem [shape: bf16[256,200], index: 2, kind: input, shape index: {}]
  %s3 = inlined_call_operand.vmem [shape: f32[1,200], index: 3, kind: input, shape index: {}]
  %s4 = inlined_call_operand.vmem [shape: bf16[200,100], index: 4, kind: input, shape index: {}]
  %s5 = inlined_call_operand.vmem [shape: f32[1,100], index: 5, kind: input, shape index: {}]
  %s6 = inlined_call_operand.vmem [shape: bf16[100,4], index: 6, kind: input, shape index: {}]
  %s7 = inlined_call_operand.vmem [shape: f32[1,4], index: 7, kind: input, shape index: {}]
  %s8 = inlined_call_operand.vmem [shape: f32[2,100], index: 8, kind: input, shape index: {}]
  %s9 = inlined_call_operand.vmem [shape: f32[1,100], index: 9, kind: input, shape index: {}]
  %s10 = inlined_call_operand.vmem [shape: bf16[100,200], index: 10, kind: input, shape index: {}]
  %s11 = inlined_call_operand.vmem [shape: f32[1,200], index: 11, kind: input, shape index: {}]
  %s12 = inlined_call_operand.vmem [shape: bf16[200,256], index: 12, kind: input, shape index: {}]
  %s13 = inlined_call_operand.vmem [shape: f32[1,256], index: 13, kind: input, shape index: {}]
  %s14 = inlined_call_operand.vmem [shape: f32[128,256], index: 14, kind: output, shape index: {0}]
  %s15 = inlined_call_operand.vmem [shape: f32[128,4], index: 15, kind: output, shape index: {1}]
  %16 = xla_tuple %s14, %s15
  %s17 = sld [smem:[#allocation0]]
  $region74: #{vae_forward.1} parent=0
    _
  %s19 = ssub.s32 1, %s17
  %s20 = scalar_select 0, %s19, %s17
  // Predicated region
  $region2: #{vae_forward.1} parent=0 // pred_check
    _
  $region3: #{vae_forward.1} parent=0 // pred_check_branch
    %22 = sbr.rel (0) target = $region5
  $region4: #{vae_forward.1} parent=0 // pred_region
    _
  $region5: #{vae_forward.1} parent=0 // pred_fallthru
    _
  // Predicated region
  $region6: #{vae_forward.1} parent=0 // pred_check
    _
  $region7: #{vae_forward.1} parent=0 // pred_check_branch
    %24 = sbr.rel (0) target = $region9
  $region8: #{vae_forward.1} parent=0 // pred_region
    _
  $region9: #{vae_forward.1} parent=0 // pred_fallthru
    _
  // Predicated region
  $region10: #{vae_forward.1} parent=0 // pred_check
    _
  $region11: #{vae_forward.1} parent=0 // pred_check_branch
    %26 = sbr.rel (0) target = $region13
  $region12: #{vae_forward.1} parent=0 // pred_region
    _
  $region13: #{vae_forward.1} parent=0 // pred_fallthru
    _
  // Predicated region
  $region14: #{vae_forward.1} parent=0 // pred_check
    _
  $region15: #{vae_forward.1} parent=0 // pred_check_branch
    %28 = sbr.rel (0) target = $region17
  $region16: #{vae_forward.1} parent=0 // pred_region
    _
  $region17: #{vae_forward.1} parent=0 // pred_fallthru
    _
  // Predicated region
  $region18: #{vae_forward.1} parent=0 // pred_check
    _
  $region19: #{vae_forward.1} parent=0 // pred_check_branch
    %30 = sbr.rel (0) target = $region21
  $region20: #{vae_forward.1} parent=0 // pred_region
    _
  $region21: #{vae_forward.1} parent=0 // pred_fallthru
    _
  // Predicated region
  $region22: #{vae_forward.1} parent=0 // pred_check
    _
  $region23: #{vae_forward.1} parent=0 // pred_check_branch
    %32 = sbr.rel (0) target = $region25
  $region24: #{vae_forward.1} parent=0 // pred_region
    _
  $region25: #{vae_forward.1} parent=0 // pred_fallthru
    _
  // Predicated region
  $region26: #{vae_forward.1} parent=0 // pred_check
    _
  $region27: #{vae_forward.1} parent=0 // pred_check_branch
    %34 = sbr.rel (0) target = $region29
  $region28: #{vae_forward.1} parent=0 // pred_region
    _
  $region29: #{vae_forward.1} parent=0 // pred_fallthru
    _
  // Predicated region
  $region30: #{vae_forward.1} parent=0 // pred_check
    _
  $region31: #{vae_forward.1} parent=0 // pred_check_branch
    %36 = sbr.rel (0) target = $region33
  $region32: #{vae_forward.1} parent=0 // pred_region
    _
  $region33: #{vae_forward.1} parent=0 // pred_fallthru
    _
  // Predicated region
  $region34: #{vae_forward.1} parent=0 // pred_check
    _
  $region35: #{vae_forward.1} parent=0 // pred_check_branch
    %38 = sbr.rel (0) target = $region37
  $region36: #{vae_forward.1} parent=0 // pred_region
    _
  $region37: #{vae_forward.1} parent=0 // pred_fallthru
    _
  // Predicated region
  $region38: #{vae_forward.1} parent=0 // pred_check
    _
  $region39: #{vae_forward.1} parent=0 // pred_check_branch
    %40 = sbr.rel (0) target = $region41
  $region40: #{vae_forward.1} parent=0 // pred_region
    _
  $region41: #{vae_forward.1} parent=0 // pred_fallthru
    _
  // Predicated region
  $region42: #{vae_forward.1} parent=0 // pred_check
    _
  $region43: #{vae_forward.1} parent=0 // pred_check_branch
    %42 = sbr.rel (0) target = $region45
  $region44: #{vae_forward.1} parent=0 // pred_region
    _
  $region45: #{vae_forward.1} parent=0 // pred_fallthru
    _
  // Predicated region
  $region46: #{vae_forward.1} parent=0 // pred_check
    _
  $region47: #{vae_forward.1} parent=0 // pred_check_branch
    %44 = sbr.rel (0) target = $region49
  $region48: #{vae_forward.1} parent=0 // pred_region
    _
  $region49: #{vae_forward.1} parent=0 // pred_fallthru
    _
  // Predicated region
  $region50: #{vae_forward.1} parent=0 // pred_check
    _
  $region51: #{vae_forward.1} parent=0 // pred_check_branch
    %46 = sbr.rel (0) target = $region53
  $region52: #{vae_forward.1} parent=0 // pred_region
    _
  $region53: #{vae_forward.1} parent=0 // pred_fallthru
    _
  // Predicated region
  $region54: #{vae_forward.1} parent=0 // pred_check
    _
  $region55: #{vae_forward.1} parent=0 // pred_check_branch
    %48 = sbr.rel (0) target = $region57
  $region56: #{vae_forward.1} parent=0 // pred_region
    _
  $region57: #{vae_forward.1} parent=0 // pred_fallthru
    _
  %v50 = vld [vmem:[%s0] sm:$0xff]
  %v51 = vld [vmem:[%s0 + $0x8] sm:$0xff]
  %v52 = vld [vmem:[%s0 + $0x10] sm:$0xff]
  %v53 = vld [vmem:[%s0 + $0x18] sm:$0xff]
  %v54 = vld [vmem:[%s0 + $0x20] sm:$0xff]
  %v55 = vld [vmem:[%s0 + $0x28] sm:$0xff]
  %v56 = vld [vmem:[%s0 + $0x30] sm:$0xff]
  %v57 = vld [vmem:[%s0 + $0x38] sm:$0xff]
  %v58 = vld [vmem:[%s0 + $0x40] sm:$0xff]
  %v59 = vld [vmem:[%s0 + $0x48] sm:$0xff]
  %v60 = vld [vmem:[%s0 + $0x50] sm:$0xff]
  %v61 = vld [vmem:[%s0 + $0x58] sm:$0xff]
  %v62 = vld [vmem:[%s0 + $0x60] sm:$0xff]
  %v63 = vld [vmem:[%s0 + $0x68] sm:$0xff]
  %v64 = vld [vmem:[%s0 + $0x70] sm:$0xff]
  %v65 = vld [vmem:[%s0 + $0x78] sm:$0xff]
  %v66 = vld [vmem:[%s2] sm:$0xff]
  %v67 = vld [vmem:[%s2 + $0x8] sm:$0xff]
  %v68 = vld [vmem:[%s2 + $0x10] sm:$0xff]
  %v69 = vld [vmem:[%s2 + $0x18] sm:$0xff]
  %v70 = vld [vmem:[%s2 + $0x20] sm:$0xff]
  %v71 = vld [vmem:[%s2 + $0x28] sm:$0xff]
  %v72 = vld [vmem:[%s2 + $0x30] sm:$0xff]
  %v73 = vld [vmem:[%s2 + $0x38] sm:$0xff]
  %v74 = vld [vmem:[%s2 + $0x40] sm:$0xff]
  %v75 = vld [vmem:[%s2 + $0x48] sm:$0xff]
  %v76 = vld [vmem:[%s2 + $0x50] sm:$0xff]
  %v77 = vld [vmem:[%s2 + $0x58] sm:$0xff]
  %v78 = vld [vmem:[%s2 + $0x60] sm:$0xff]
  %v79 = vld [vmem:[%s2 + $0x68] sm:$0xff]
  %v80 = vld [vmem:[%s2 + $0x70] sm:$0xff]
  %v81 = vld [vmem:[%s2 + $0x78] sm:$0xff]
  %v82 = vld [vmem:[%s2 + $0x80] sm:$0xff]
  %v83 = vld [vmem:[%s2 + $0x88] sm:$0xff]
  %v84 = vld [vmem:[%s2 + $0x90] sm:$0xff]
  %v85 = vld [vmem:[%s2 + $0x98] sm:$0xff]
  %v86 = vld [vmem:[%s2 + $0xa0] sm:$0xff]
  %v87 = vld [vmem:[%s2 + $0xa8] sm:$0xff]
  %v88 = vld [vmem:[%s2 + $0xb0] sm:$0xff]
  %v89 = vld [vmem:[%s2 + $0xb8] sm:$0xff]
  %v90 = vld [vmem:[%s2 + $0xc0] sm:$0xff]
  %v91 = vld [vmem:[%s2 + $0xc8] sm:$0xff]
  %v92 = vld [vmem:[%s2 + $0xd0] sm:$0xff]
  %v93 = vld [vmem:[%s2 + $0xd8] sm:$0xff]
  %v94 = vld [vmem:[%s2 + $0xe0] sm:$0xff]
  %v95 = vld [vmem:[%s2 + $0xe8] sm:$0xff]
  %v96 = vld [vmem:[%s2 + $0xf0] sm:$0xff]
  %v97 = vld [vmem:[%s2 + $0xf8] sm:$0xff]
  %v98 = vld [vmem:[%s3] sm:$0x3]
  %v100 = vperm.slane %v98, 0
  %v101 = vperm.slane %v98, 1
  %v120 = vunpack.c.l.b16 %v50
  %v121 = vunpack.c.h.b16 %v50
  %v122 = vunpack.c.l.b16 %v51
  %v123 = vunpack.c.h.b16 %v51
  %v124 = vunpack.c.l.b16 %v52
  %v125 = vunpack.c.h.b16 %v52
  %v126 = vunpack.c.l.b16 %v53
  %v127 = vunpack.c.h.b16 %v53
  %v128 = vunpack.c.l.b16 %v54
  %v129 = vunpack.c.h.b16 %v54
  %v130 = vunpack.c.l.b16 %v55
  %v131 = vunpack.c.h.b16 %v55
  %v132 = vunpack.c.l.b16 %v56
  %v133 = vunpack.c.h.b16 %v56
  %v134 = vunpack.c.l.b16 %v57
  %v135 = vunpack.c.h.b16 %v57
  %v136 = vunpack.c.l.b16 %v58
  %v137 = vunpack.c.h.b16 %v58
  %v138 = vunpack.c.l.b16 %v59
  %v139 = vunpack.c.h.b16 %v59
  %v140 = vunpack.c.l.b16 %v60
  %v141 = vunpack.c.h.b16 %v60
  %v142 = vunpack.c.l.b16 %v61
  %v143 = vunpack.c.h.b16 %v61
  %v144 = vunpack.c.l.b16 %v62
  %v145 = vunpack.c.h.b16 %v62
  %v146 = vunpack.c.l.b16 %v63
  %v147 = vunpack.c.h.b16 %v63
  %v148 = vunpack.c.l.b16 %v64
  %v149 = vunpack.c.h.b16 %v64
  %v150 = vunpack.c.l.b16 %v65
  %v151 = vunpack.c.h.b16 %v65
  %v152 = vpack.c.b16 %v122, %v120
  %v153 = vpack.c.b16 %v123, %v121
  %v154 = vpack.c.b16 %v126, %v124
  %v155 = vpack.c.b16 %v127, %v125
  %v156 = vpack.c.b16 %v130, %v128
  %v157 = vpack.c.b16 %v131, %v129
  %v158 = vpack.c.b16 %v134, %v132
  %v159 = vpack.c.b16 %v135, %v133
  %v160 = vpack.c.b16 %v138, %v136
  %v161 = vpack.c.b16 %v139, %v137
  %v162 = vpack.c.b16 %v142, %v140
  %v163 = vpack.c.b16 %v143, %v141
  %v164 = vpack.c.b16 %v146, %v144
  %v165 = vpack.c.b16 %v147, %v145
  %v166 = vpack.c.b16 %v150, %v148
  %v167 = vpack.c.b16 %v151, %v149
  %v216 = vunpack.c.l.b16 %v66
  %v217 = vunpack.c.h.b16 %v66
  %v218 = vunpack.c.l.b16 %v67
  %v219 = vunpack.c.h.b16 %v67
  %v220 = vunpack.c.l.b16 %v68
  %v221 = vunpack.c.h.b16 %v68
  %v222 = vunpack.c.l.b16 %v69
  %v223 = vunpack.c.h.b16 %v69
  %v224 = vunpack.c.l.b16 %v70
  %v225 = vunpack.c.h.b16 %v70
  %v226 = vunpack.c.l.b16 %v71
  %v227 = vunpack.c.h.b16 %v71
  %v228 = vunpack.c.l.b16 %v72
  %v229 = vunpack.c.h.b16 %v72
  %v230 = vunpack.c.l.b16 %v73
  %v231 = vunpack.c.h.b16 %v73
  %v232 = vunpack.c.l.b16 %v74
  %v233 = vunpack.c.h.b16 %v74
  %v234 = vunpack.c.l.b16 %v75
  %v235 = vunpack.c.h.b16 %v75
  %v236 = vunpack.c.l.b16 %v76
  %v237 = vunpack.c.h.b16 %v76
  %v238 = vunpack.c.l.b16 %v77
  %v239 = vunpack.c.h.b16 %v77
  %v240 = vunpack.c.l.b16 %v78
  %v241 = vunpack.c.h.b16 %v78
  %v242 = vunpack.c.l.b16 %v79
  %v243 = vunpack.c.h.b16 %v79
  %v244 = vunpack.c.l.b16 %v80
  %v245 = vunpack.c.h.b16 %v80
  %v246 = vunpack.c.l.b16 %v81
  %v247 = vunpack.c.h.b16 %v81
  %v248 = vunpack.c.l.b16 %v82
  %v249 = vunpack.c.h.b16 %v82
  %v250 = vunpack.c.l.b16 %v83
  %v251 = vunpack.c.h.b16 %v83
  %v252 = vunpack.c.l.b16 %v84
  %v253 = vunpack.c.h.b16 %v84
  %v254 = vunpack.c.l.b16 %v85
  %v255 = vunpack.c.h.b16 %v85
  %v256 = vunpack.c.l.b16 %v86
  %v257 = vunpack.c.h.b16 %v86
  %v258 = vunpack.c.l.b16 %v87
  %v259 = vunpack.c.h.b16 %v87
  %v260 = vunpack.c.l.b16 %v88
  %v261 = vunpack.c.h.b16 %v88
  %v262 = vunpack.c.l.b16 %v89
  %v263 = vunpack.c.h.b16 %v89
  %v264 = vunpack.c.l.b16 %v90
  %v265 = vunpack.c.h.b16 %v90
  %v266 = vunpack.c.l.b16 %v91
  %v267 = vunpack.c.h.b16 %v91
  %v268 = vunpack.c.l.b16 %v92
  %v269 = vunpack.c.h.b16 %v92
  %v270 = vunpack.c.l.b16 %v93
  %v271 = vunpack.c.h.b16 %v93
  %v272 = vunpack.c.l.b16 %v94
  %v273 = vunpack.c.h.b16 %v94
  %v274 = vunpack.c.l.b16 %v95
  %v275 = vunpack.c.h.b16 %v95
  %v276 = vunpack.c.l.b16 %v96
  %v277 = vunpack.c.h.b16 %v96
  %v278 = vunpack.c.l.b16 %v97
  %v279 = vunpack.c.h.b16 %v97
  %v280 = vpack.c.b16 %v218, %v216
  %v281 = vpack.c.b16 %v219, %v217
  %v282 = vpack.c.b16 %v222, %v220
  %v283 = vpack.c.b16 %v223, %v221
  %v284 = vpack.c.b16 %v226, %v224
  %v285 = vpack.c.b16 %v227, %v225
  %v286 = vpack.c.b16 %v230, %v228
  %v287 = vpack.c.b16 %v231, %v229
  %v288 = vpack.c.b16 %v234, %v232
  %v289 = vpack.c.b16 %v235, %v233
  %v290 = vpack.c.b16 %v238, %v236
  %v291 = vpack.c.b16 %v239, %v237
  %v292 = vpack.c.b16 %v242, %v240
  %v293 = vpack.c.b16 %v243, %v241
  %v294 = vpack.c.b16 %v246, %v244
  %v295 = vpack.c.b16 %v247, %v245
  %v296 = vpack.c.b16 %v250, %v248
  %v297 = vpack.c.b16 %v251, %v249
  %v298 = vpack.c.b16 %v254, %v252
  %v299 = vpack.c.b16 %v255, %v253
  %v300 = vpack.c.b16 %v258, %v256
  %v301 = vpack.c.b16 %v259, %v257
  %v302 = vpack.c.b16 %v262, %v260
  %v303 = vpack.c.b16 %v263, %v261
  %v304 = vpack.c.b16 %v266, %v264
  %v305 = vpack.c.b16 %v267, %v265
  %v306 = vpack.c.b16 %v270, %v268
  %v307 = vpack.c.b16 %v271, %v269
  %v308 = vpack.c.b16 %v274, %v272
  %v309 = vpack.c.b16 %v275, %v273
  %v310 = vpack.c.b16 %v278, %v276
  %v311 = vpack.c.b16 %v279, %v277
  %344 = vmatpush.bf16.msra.mxu0 %v294
  %345 = vmatpush.bf16.msra.mxu0 %v292
  %346 = vmatpush.bf16.msra.mxu0 %v290
  %347 = vmatpush.bf16.msra.mxu0 %v288
  %348 = vmatpush.bf16.msra.mxu0 %v286
  %349 = vmatpush.bf16.msra.mxu0 %v284
  %350 = vmatpush.bf16.msra.mxu0 %v282
  %351 = vmatpush.bf16.msra.mxu0 %v280
  %352 = vmatmul.bf16.gmra.mxu0 %v152
  %v353 = vpop.f32.mrf.mxu0
  %v354 = vadd.f32 %v100, %v353
  %v355 = vpop.f32.mrf.mxu0
  %v356 = vadd.f32 %v100, %v355
  %357 = vmatmul.bf16.gmra.mxu0 %v154
  %v358 = vpop.f32.mrf.mxu0
  %v359 = vadd.f32 %v100, %v358
  %v360 = vpop.f32.mrf.mxu0
  %v361 = vadd.f32 %v100, %v360
  %362 = vmatmul.bf16.gmra.mxu0 %v156
  %v363 = vpop.f32.mrf.mxu0
  %v364 = vadd.f32 %v100, %v363
  %v365 = vpop.f32.mrf.mxu0
  %v366 = vadd.f32 %v100, %v365
  %367 = vmatmul.bf16.gmra.mxu0 %v158
  %v368 = vpop.f32.mrf.mxu0
  %v369 = vadd.f32 %v100, %v368
  %v370 = vpop.f32.mrf.mxu0
  %v371 = vadd.f32 %v100, %v370
  %372 = vmatmul.bf16.gmra.mxu0 %v160
  %v373 = vpop.f32.mrf.mxu0
  %v374 = vadd.f32 %v100, %v373
  %v375 = vpop.f32.mrf.mxu0
  %v376 = vadd.f32 %v100, %v375
  %377 = vmatmul.bf16.gmra.mxu0 %v162
  %v378 = vpop.f32.mrf.mxu0
  %v379 = vadd.f32 %v100, %v378
  %v380 = vpop.f32.mrf.mxu0
  %v381 = vadd.f32 %v100, %v380
  %382 = vmatmul.bf16.gmra.mxu0 %v164
  %v383 = vpop.f32.mrf.mxu0
  %v384 = vadd.f32 %v100, %v383
  %v385 = vpop.f32.mrf.mxu0
  %v386 = vadd.f32 %v100, %v385
  %387 = vmatmul.bf16.gmra.mxu0 %v166
  %v388 = vpop.f32.mrf.mxu0
  %v389 = vadd.f32 %v100, %v388
  %v390 = vpop.f32.mrf.mxu0
  %v391 = vadd.f32 %v100, %v390
  %392 = vdwg.mxu0
  %393 = vmatpush.bf16.msra.mxu0 %v310
  %394 = vmatpush.bf16.msra.mxu0 %v308
  %395 = vmatpush.bf16.msra.mxu0 %v306
  %396 = vmatpush.bf16.msra.mxu0 %v304
  %397 = vmatpush.bf16.msra.mxu0 %v302
  %398 = vmatpush.bf16.msra.mxu0 %v300
  %399 = vmatpush.bf16.msra.mxu0 %v298
  %400 = vmatpush.bf16.msra.mxu0 %v296
  %401 = vmatmul.bf16.gmra.mxu0 %v153
  %v402 = vpop.f32.mrf.mxu0
  %v403 = vadd.f32 %v354, %v402
  %v404 = vpop.f32.mrf.mxu0
  %v405 = vadd.f32 %v356, %v404
  %406 = vmatmul.bf16.gmra.mxu0 %v155
  %v407 = vpop.f32.mrf.mxu0
  %v408 = vadd.f32 %v359, %v407
  %v409 = vpop.f32.mrf.mxu0
  %v410 = vadd.f32 %v361, %v409
  %411 = vmatmul.bf16.gmra.mxu0 %v157
  %v412 = vpop.f32.mrf.mxu0
  %v413 = vadd.f32 %v364, %v412
  %v414 = vpop.f32.mrf.mxu0
  %v415 = vadd.f32 %v366, %v414
  %416 = vmatmul.bf16.gmra.mxu0 %v159
  %v417 = vpop.f32.mrf.mxu0
  %v418 = vadd.f32 %v369, %v417
  %v419 = vpop.f32.mrf.mxu0
  %v420 = vadd.f32 %v371, %v419
  %421 = vmatmul.bf16.gmra.mxu0 %v161
  %v422 = vpop.f32.mrf.mxu0
  %v423 = vadd.f32 %v374, %v422
  %v424 = vpop.f32.mrf.mxu0
  %v425 = vadd.f32 %v376, %v424
  %426 = vmatmul.bf16.gmra.mxu0 %v163
  %v427 = vpop.f32.mrf.mxu0
  %v428 = vadd.f32 %v379, %v427
  %v429 = vpop.f32.mrf.mxu0
  %v430 = vadd.f32 %v381, %v429
  %431 = vmatmul.bf16.gmra.mxu0 %v165
  %v432 = vpop.f32.mrf.mxu0
  %v433 = vadd.f32 %v384, %v432
  %v434 = vpop.f32.mrf.mxu0
  %v435 = vadd.f32 %v386, %v434
  %436 = vmatmul.bf16.gmra.mxu0 %v167
  %v437 = vpop.f32.mrf.mxu0
  %v438 = vadd.f32 %v389, %v437
  %v439 = vpop.f32.mrf.mxu0
  %v440 = vadd.f32 %v391, %v439
  %441 = vdwg.mxu0
  %442 = vmatpush.bf16.msra.mxu0 %v295
  %443 = vmatpush.bf16.msra.mxu0 %v293
  %444 = vmatpush.bf16.msra.mxu0 %v291
  %445 = vmatpush.bf16.msra.mxu0 %v289
  %446 = vmatpush.bf16.msra.mxu0 %v287
  %447 = vmatpush.bf16.msra.mxu0 %v285
  %448 = vmatpush.bf16.msra.mxu0 %v283
  %449 = vmatpush.bf16.msra.mxu0 %v281
  %450 = vmatmul.bf16.gmra.mxu0 %v152
  %v451 = vpop.f32.mrf.mxu0
  %v452 = vadd.f32 %v101, %v451
  %v453 = vpop.f32.mrf.mxu0
  %v454 = vadd.f32 %v101, %v453
  %455 = vmatmul.bf16.gmra.mxu0 %v154
  %v456 = vpop.f32.mrf.mxu0
  %v457 = vadd.f32 %v101, %v456
  %v458 = vpop.f32.mrf.mxu0
  %v459 = vadd.f32 %v101, %v458
  %460 = vmatmul.bf16.gmra.mxu0 %v156
  %v461 = vpop.f32.mrf.mxu0
  %v462 = vadd.f32 %v101, %v461
  %v463 = vpop.f32.mrf.mxu0
  %v464 = vadd.f32 %v101, %v463
  %465 = vmatmul.bf16.gmra.mxu0 %v158
  %v466 = vpop.f32.mrf.mxu0
  %v467 = vadd.f32 %v101, %v466
  %v468 = vpop.f32.mrf.mxu0
  %v469 = vadd.f32 %v101, %v468
  %470 = vmatmul.bf16.gmra.mxu0 %v160
  %v471 = vpop.f32.mrf.mxu0
  %v472 = vadd.f32 %v101, %v471
  %v473 = vpop.f32.mrf.mxu0
  %v474 = vadd.f32 %v101, %v473
  %475 = vmatmul.bf16.gmra.mxu0 %v162
  %v476 = vpop.f32.mrf.mxu0
  %v477 = vadd.f32 %v101, %v476
  %v478 = vpop.f32.mrf.mxu0
  %v479 = vadd.f32 %v101, %v478
  %480 = vmatmul.bf16.gmra.mxu0 %v164
  %v481 = vpop.f32.mrf.mxu0
  %v482 = vadd.f32 %v101, %v481
  %v483 = vpop.f32.mrf.mxu0
  %v484 = vadd.f32 %v101, %v483
  %485 = vmatmul.bf16.gmra.mxu0 %v166
  %v486 = vpop.f32.mrf.mxu0
  %v487 = vadd.f32 %v101, %v486
  %v488 = vpop.f32.mrf.mxu0
  %v489 = vadd.f32 %v101, %v488
  %490 = vdwg.mxu0
  %491 = vmatpush.bf16.msra.mxu0 %v311
  %492 = vmatpush.bf16.msra.mxu0 %v309
  %493 = vmatpush.bf16.msra.mxu0 %v307
  %494 = vmatpush.bf16.msra.mxu0 %v305
  %495 = vmatpush.bf16.msra.mxu0 %v303
  %496 = vmatpush.bf16.msra.mxu0 %v301
  %497 = vmatpush.bf16.msra.mxu0 %v299
  %498 = vmatpush.bf16.msra.mxu0 %v297
  %499 = vmatmul.bf16.gmra.mxu0 %v153
  %v500 = vpop.f32.mrf.mxu0
  %v501 = vadd.f32 %v452, %v500
  %v502 = vpop.f32.mrf.mxu0
  %v503 = vadd.f32 %v454, %v502
  %504 = vmatmul.bf16.gmra.mxu0 %v155
  %v505 = vpop.f32.mrf.mxu0
  %v506 = vadd.f32 %v457, %v505
  %v507 = vpop.f32.mrf.mxu0
  %v508 = vadd.f32 %v459, %v507
  %509 = vmatmul.bf16.gmra.mxu0 %v157
  %v510 = vpop.f32.mrf.mxu0
  %v511 = vadd.f32 %v462, %v510
  %v512 = vpop.f32.mrf.mxu0
  %v513 = vadd.f32 %v464, %v512
  %514 = vmatmul.bf16.gmra.mxu0 %v159
  %v515 = vpop.f32.mrf.mxu0
  %v516 = vadd.f32 %v467, %v515
  %v517 = vpop.f32.mrf.mxu0
  %v518 = vadd.f32 %v469, %v517
  %519 = vmatmul.bf16.gmra.mxu0 %v161
  %v520 = vpop.f32.mrf.mxu0
  %v521 = vadd.f32 %v472, %v520
  %v522 = vpop.f32.mrf.mxu0
  %v523 = vadd.f32 %v474, %v522
  %524 = vmatmul.bf16.gmra.mxu0 %v163
  %v525 = vpop.f32.mrf.mxu0
  %v526 = vadd.f32 %v477, %v525
  %v527 = vpop.f32.mrf.mxu0
  %v528 = vadd.f32 %v479, %v527
  %529 = vmatmul.bf16.gmra.mxu0 %v165
  %v530 = vpop.f32.mrf.mxu0
  %v531 = vadd.f32 %v482, %v530
  %v532 = vpop.f32.mrf.mxu0
  %v533 = vadd.f32 %v484, %v532
  %534 = vmatmul.bf16.gmra.mxu0 %v167
  %v535 = vpop.f32.mrf.mxu0
  %v536 = vadd.f32 %v487, %v535
  %v537 = vpop.f32.mrf.mxu0
  %v538 = vadd.f32 %v489, %v537
  %539 = vdwg.mxu0
  %v540 = vmax.f32 %v403, 0.0
  %v541 = vmax.f32 %v501, 0.0
  %v542 = vmax.f32 %v405, 0.0
  %v543 = vmax.f32 %v503, 0.0
  %v544 = vmax.f32 %v408, 0.0
  %v545 = vmax.f32 %v506, 0.0
  %v546 = vmax.f32 %v410, 0.0
  %v547 = vmax.f32 %v508, 0.0
  %v548 = vmax.f32 %v413, 0.0
  %v549 = vmax.f32 %v511, 0.0
  %v550 = vmax.f32 %v415, 0.0
  %v551 = vmax.f32 %v513, 0.0
  %v552 = vmax.f32 %v418, 0.0
  %v553 = vmax.f32 %v516, 0.0
  %v554 = vmax.f32 %v420, 0.0
  %v555 = vmax.f32 %v518, 0.0
  %v556 = vmax.f32 %v423, 0.0
  %v557 = vmax.f32 %v521, 0.0
  %v558 = vmax.f32 %v425, 0.0
  %v559 = vmax.f32 %v523, 0.0
  %v560 = vmax.f32 %v428, 0.0
  %v561 = vmax.f32 %v526, 0.0
  %v562 = vmax.f32 %v430, 0.0
  %v563 = vmax.f32 %v528, 0.0
  %v564 = vmax.f32 %v433, 0.0
  %v565 = vmax.f32 %v531, 0.0
  %v566 = vmax.f32 %v435, 0.0
  %v567 = vmax.f32 %v533, 0.0
  %v568 = vmax.f32 %v438, 0.0
  %v569 = vmax.f32 %v536, 0.0
  %v570 = vmax.f32 %v440, 0.0
  %v571 = vmax.f32 %v538, 0.0
  %v572 = vpack.c.bf16 %v542, %v540
  %v573 = vpack.c.bf16 %v543, %v541
  %v574 = vpack.c.bf16 %v546, %v544
  %v575 = vpack.c.bf16 %v547, %v545
  %v576 = vpack.c.bf16 %v550, %v548
  %v577 = vpack.c.bf16 %v551, %v549
  %v578 = vpack.c.bf16 %v554, %v552
  %v579 = vpack.c.bf16 %v555, %v553
  %v580 = vpack.c.bf16 %v558, %v556
  %v581 = vpack.c.bf16 %v559, %v557
  %v582 = vpack.c.bf16 %v562, %v560
  %v583 = vpack.c.bf16 %v563, %v561
  %v584 = vpack.c.bf16 %v566, %v564
  %v585 = vpack.c.bf16 %v567, %v565
  %v586 = vpack.c.bf16 %v570, %v568
  %v587 = vpack.c.bf16 %v571, %v569
  %v588 = vld [vmem:[%s4] sm:$0xf]
  %v589 = vld [vmem:[%s4 + $0x4] sm:$0xf]
  %v590 = vld [vmem:[%s4 + $0x8] sm:$0xf]
  %v591 = vld [vmem:[%s4 + $0xc] sm:$0xf]
  %v592 = vld [vmem:[%s4 + $0x10] sm:$0xf]
  %v593 = vld [vmem:[%s4 + $0x14] sm:$0xf]
  %v594 = vld [vmem:[%s4 + $0x18] sm:$0xf]
  %v595 = vld [vmem:[%s4 + $0x1c] sm:$0xf]
  %v596 = vld [vmem:[%s4 + $0x20] sm:$0xf]
  %v597 = vld [vmem:[%s4 + $0x24] sm:$0xf]
  %v598 = vld [vmem:[%s4 + $0x28] sm:$0xf]
  %v599 = vld [vmem:[%s4 + $0x2c] sm:$0xf]
  %v600 = vld [vmem:[%s4 + $0x30] sm:$0xf]
  %v601 = vld [vmem:[%s4 + $0x34] sm:$0xf]
  %v602 = vld [vmem:[%s4 + $0x38] sm:$0xf]
  %v603 = vld [vmem:[%s4 + $0x3c] sm:$0xf]
  %v604 = vld [vmem:[%s4 + $0x40] sm:$0xf]
  %v605 = vld [vmem:[%s4 + $0x44] sm:$0xf]
  %v606 = vld [vmem:[%s4 + $0x48] sm:$0xf]
  %v607 = vld [vmem:[%s4 + $0x4c] sm:$0xf]
  %v608 = vld [vmem:[%s4 + $0x50] sm:$0xf]
  %v609 = vld [vmem:[%s4 + $0x54] sm:$0xf]
  %v610 = vld [vmem:[%s4 + $0x58] sm:$0xf]
  %v611 = vld [vmem:[%s4 + $0x5c] sm:$0xf]
  %v612 = vld [vmem:[%s4 + $0x60] sm:$0xf]
  %v613 = vld [vmem:[%s5] sm:$0x1]
  %v615 = vperm.slane %v613, 0
  %v642 = vunpack.c.l.b16 %v588
  %v643 = vunpack.c.l.b16 %v589
  %v644 = vunpack.c.l.b16 %v590
  %v645 = vunpack.c.l.b16 %v591
  %v646 = vunpack.c.l.b16 %v592
  %v647 = vunpack.c.l.b16 %v593
  %v648 = vunpack.c.l.b16 %v594
  %v649 = vunpack.c.l.b16 %v595
  %v650 = vunpack.c.l.b16 %v596
  %v651 = vunpack.c.l.b16 %v597
  %v652 = vunpack.c.l.b16 %v598
  %v653 = vunpack.c.l.b16 %v599
  %v654 = vunpack.c.l.b16 %v600
  %v655 = vunpack.c.l.b16 %v601
  %v656 = vunpack.c.l.b16 %v602
  %v657 = vunpack.c.l.b16 %v603
  %v658 = vunpack.c.l.b16 %v604
  %v659 = vunpack.c.l.b16 %v605
  %v660 = vunpack.c.l.b16 %v606
  %v661 = vunpack.c.l.b16 %v607
  %v662 = vunpack.c.l.b16 %v608
  %v663 = vunpack.c.l.b16 %v609
  %v664 = vunpack.c.l.b16 %v610
  %v665 = vunpack.c.l.b16 %v611
  %v666 = vunpack.c.l.b16 %v612
  %v667 = vpack.c.b16 %v643, %v642
  %v668 = vpack.c.b16 %v645, %v644
  %v669 = vpack.c.b16 %v647, %v646
  %v670 = vpack.c.b16 %v649, %v648
  %v671 = vpack.c.b16 %v651, %v650
  %v672 = vpack.c.b16 %v653, %v652
  %v673 = vpack.c.b16 %v655, %v654
  %v674 = vpack.c.b16 %v657, %v656
  %v675 = vpack.c.b16 %v659, %v658
  %v676 = vpack.c.b16 %v661, %v660
  %v677 = vpack.c.b16 %v663, %v662
  %v678 = vpack.c.b16 %v665, %v664
  %v679 = vpack.c.b16 %v666, %v666
  %vm692 = vcmask 588800
  %v694 = vsel %vm692, %v573, 0
  %v697 = vsel %vm692, %v575, 0
  %v700 = vsel %vm692, %v577, 0
  %v703 = vsel %vm692, %v579, 0
  %v706 = vsel %vm692, %v581, 0
  %v709 = vsel %vm692, %v583, 0
  %v712 = vsel %vm692, %v585, 0
  %v715 = vsel %vm692, %v587, 0
  %vm717 = vcmask 1043456
  %v719 = vsel %vm717, %v679, 0
  %721 = vmatpush.bf16.msra.mxu0 %v674
  %722 = vmatpush.bf16.msra.mxu0 %v673
  %723 = vmatpush.bf16.msra.mxu0 %v672
  %724 = vmatpush.bf16.msra.mxu0 %v671
  %725 = vmatpush.bf16.msra.mxu0 %v670
  %726 = vmatpush.bf16.msra.mxu0 %v669
  %727 = vmatpush.bf16.msra.mxu0 %v668
  %728 = vmatpush.bf16.msra.mxu0 %v667
  %729 = vmatmul.bf16.gmra.mxu0 %v572
  %v730 = vpop.f32.mrf.mxu0
  %v731 = vadd.f32 %v615, %v730
  %v732 = vpop.f32.mrf.mxu0
  %v733 = vadd.f32 %v615, %v732
  %734 = vmatmul.bf16.gmra.mxu0 %v574
  %v735 = vpop.f32.mrf.mxu0
  %v736 = vadd.f32 %v615, %v735
  %v737 = vpop.f32.mrf.mxu0
  %v738 = vadd.f32 %v615, %v737
  %739 = vmatmul.bf16.gmra.mxu0 %v576
  %v740 = vpop.f32.mrf.mxu0
  %v741 = vadd.f32 %v615, %v740
  %v742 = vpop.f32.mrf.mxu0
  %v743 = vadd.f32 %v615, %v742
  %744 = vmatmul.bf16.gmra.mxu0 %v578
  %v745 = vpop.f32.mrf.mxu0
  %v746 = vadd.f32 %v615, %v745
  %v747 = vpop.f32.mrf.mxu0
  %v748 = vadd.f32 %v615, %v747
  %749 = vmatmul.bf16.gmra.mxu0 %v580
  %v750 = vpop.f32.mrf.mxu0
  %v751 = vadd.f32 %v615, %v750
  %v752 = vpop.f32.mrf.mxu0
  %v753 = vadd.f32 %v615, %v752
  %754 = vmatmul.bf16.gmra.mxu0 %v582
  %v755 = vpop.f32.mrf.mxu0
  %v756 = vadd.f32 %v615, %v755
  %v757 = vpop.f32.mrf.mxu0
  %v758 = vadd.f32 %v615, %v757
  %759 = vmatmul.bf16.gmra.mxu0 %v584
  %v760 = vpop.f32.mrf.mxu0
  %v761 = vadd.f32 %v615, %v760
  %v762 = vpop.f32.mrf.mxu0
  %v763 = vadd.f32 %v615, %v762
  %764 = vmatmul.bf16.gmra.mxu0 %v586
  %v765 = vpop.f32.mrf.mxu0
  %v766 = vadd.f32 %v615, %v765
  %v767 = vpop.f32.mrf.mxu0
  %v768 = vadd.f32 %v615, %v767
  %769 = vdwg.mxu0
  %770 = vmatpush.bf16.msra.mxu0 0
  %771 = vmatpush.bf16.msra.mxu0 0
  %772 = vmatpush.bf16.msra.mxu0 0
  %773 = vmatpush.bf16.msra.mxu0 %v719
  %774 = vmatpush.bf16.msra.mxu0 %v678
  %775 = vmatpush.bf16.msra.mxu0 %v677
  %776 = vmatpush.bf16.msra.mxu0 %v676
  %777 = vmatpush.bf16.msra.mxu0 %v675
  %778 = vmatmul.bf16.gmra.mxu0 %v694
  %v779 = vpop.f32.mrf.mxu0
  %v780 = vadd.f32 %v731, %v779
  %v781 = vpop.f32.mrf.mxu0
  %v782 = vadd.f32 %v733, %v781
  %783 = vmatmul.bf16.gmra.mxu0 %v697
  %v784 = vpop.f32.mrf.mxu0
  %v785 = vadd.f32 %v736, %v784
  %v786 = vpop.f32.mrf.mxu0
  %v787 = vadd.f32 %v738, %v786
  %788 = vmatmul.bf16.gmra.mxu0 %v700
  %v789 = vpop.f32.mrf.mxu0
  %v790 = vadd.f32 %v741, %v789
  %v791 = vpop.f32.mrf.mxu0
  %v792 = vadd.f32 %v743, %v791
  %793 = vmatmul.bf16.gmra.mxu0 %v703
  %v794 = vpop.f32.mrf.mxu0
  %v795 = vadd.f32 %v746, %v794
  %v796 = vpop.f32.mrf.mxu0
  %v797 = vadd.f32 %v748, %v796
  %798 = vmatmul.bf16.gmra.mxu0 %v706
  %v799 = vpop.f32.mrf.mxu0
  %v800 = vadd.f32 %v751, %v799
  %v801 = vpop.f32.mrf.mxu0
  %v802 = vadd.f32 %v753, %v801
  %803 = vmatmul.bf16.gmra.mxu0 %v709
  %v804 = vpop.f32.mrf.mxu0
  %v805 = vadd.f32 %v756, %v804
  %v806 = vpop.f32.mrf.mxu0
  %v807 = vadd.f32 %v758, %v806
  %808 = vmatmul.bf16.gmra.mxu0 %v712
  %v809 = vpop.f32.mrf.mxu0
  %v810 = vadd.f32 %v761, %v809
  %v811 = vpop.f32.mrf.mxu0
  %v812 = vadd.f32 %v763, %v811
  %813 = vmatmul.bf16.gmra.mxu0 %v715
  %v814 = vpop.f32.mrf.mxu0
  %v815 = vadd.f32 %v766, %v814
  %v816 = vpop.f32.mrf.mxu0
  %v817 = vadd.f32 %v768, %v816
  %818 = vdwg.mxu0
  %v819 = vmax.f32 %v780, 0.0
  %v820 = vmax.f32 %v782, 0.0
  %v821 = vmax.f32 %v785, 0.0
  %v822 = vmax.f32 %v787, 0.0
  %v823 = vmax.f32 %v790, 0.0
  %v824 = vmax.f32 %v792, 0.0
  %v825 = vmax.f32 %v795, 0.0
  %v826 = vmax.f32 %v797, 0.0
  %v827 = vmax.f32 %v800, 0.0
  %v828 = vmax.f32 %v802, 0.0
  %v829 = vmax.f32 %v805, 0.0
  %v830 = vmax.f32 %v807, 0.0
  %v831 = vmax.f32 %v810, 0.0
  %v832 = vmax.f32 %v812, 0.0
  %v833 = vmax.f32 %v815, 0.0
  %v834 = vmax.f32 %v817, 0.0
  %v835 = vpack.c.bf16 %v820, %v819
  %v836 = vpack.c.bf16 %v822, %v821
  %v837 = vpack.c.bf16 %v824, %v823
  %v838 = vpack.c.bf16 %v826, %v825
  %v839 = vpack.c.bf16 %v828, %v827
  %v840 = vpack.c.bf16 %v830, %v829
  %v841 = vpack.c.bf16 %v832, %v831
  %v842 = vpack.c.bf16 %v834, %v833
  %v843 = vld [vmem:[%s6] sm:$0xf]
  %v844 = vld [vmem:[%s6 + $0x4] sm:$0xf]
  %v845 = vld [vmem:[%s6 + $0x8] sm:$0xf]
  %v846 = vld [vmem:[%s6 + $0xc] sm:$0xf]
  %v847 = vld [vmem:[%s6 + $0x10] sm:$0xf]
  %v848 = vld [vmem:[%s6 + $0x14] sm:$0xf]
  %v849 = vld [vmem:[%s6 + $0x18] sm:$0xf]
  %v850 = vld [vmem:[%s6 + $0x1c] sm:$0xf]
  %v851 = vld [vmem:[%s6 + $0x20] sm:$0xf]
  %v852 = vld [vmem:[%s6 + $0x24] sm:$0xf]
  %v853 = vld [vmem:[%s6 + $0x28] sm:$0xf]
  %v854 = vld [vmem:[%s6 + $0x2c] sm:$0xf]
  %v855 = vld [vmem:[%s6 + $0x30] sm:$0x3]
  %v856 = vld [vmem:[%s7] sm:$0x1]
  %v858 = vperm.slane %v856, 0
  %v873 = vunpack.c.l.b16 %v843
  %v874 = vunpack.c.l.b16 %v844
  %v875 = vunpack.c.l.b16 %v845
  %v876 = vunpack.c.l.b16 %v846
  %v877 = vunpack.c.l.b16 %v847
  %v878 = vunpack.c.l.b16 %v848
  %v879 = vunpack.c.l.b16 %v849
  %v880 = vunpack.c.l.b16 %v850
  %v881 = vunpack.c.l.b16 %v851
  %v882 = vunpack.c.l.b16 %v852
  %v883 = vunpack.c.l.b16 %v853
  %v884 = vunpack.c.l.b16 %v854
  %v885 = vunpack.c.l.b16 %v855
  %v886 = vpack.c.b16 %v874, %v873
  %v887 = vpack.c.b16 %v876, %v875
  %v888 = vpack.c.b16 %v878, %v877
  %v889 = vpack.c.b16 %v880, %v879
  %v890 = vpack.c.b16 %v882, %v881
  %v891 = vpack.c.b16 %v884, %v883
  %v892 = vpack.c.b16 %v885, %v885
  %vm899 = vcmask 818176
  %v901 = vsel %vm899, %v835, 0
  %v904 = vsel %vm899, %v836, 0
  %v907 = vsel %vm899, %v837, 0
  %v910 = vsel %vm899, %v838, 0
  %v913 = vsel %vm899, %v839, 0
  %v916 = vsel %vm899, %v840, 0
  %v919 = vsel %vm899, %v841, 0
  %v922 = vsel %vm899, %v842, 0
  %vm924 = vcmask 1041408
  %v926 = vsel %vm924, %v892, 0
  %928 = vmatpush.bf16.msra.mxu0 0
  %929 = vmatpush.bf16.msra.mxu0 %v926
  %930 = vmatpush.bf16.msra.mxu0 %v891
  %931 = vmatpush.bf16.msra.mxu0 %v890
  %932 = vmatpush.bf16.msra.mxu0 %v889
  %933 = vmatpush.bf16.msra.mxu0 %v888
  %934 = vmatpush.bf16.msra.mxu0 %v887
  %935 = vmatpush.bf16.msra.mxu0 %v886
  %936 = vmatmul.bf16.gmra.mxu0 %v901
  %v937 = vpop.f32.mrf.mxu0
  %v938 = vadd.f32 %v858, %v937
  %v939 = vpop.f32.mrf.mxu0
  %v940 = vadd.f32 %v858, %v939
  %941 = vmatmul.bf16.gmra.mxu0 %v904
  %v942 = vpop.f32.mrf.mxu0
  %v943 = vadd.f32 %v858, %v942
  %v944 = vpop.f32.mrf.mxu0
  %v945 = vadd.f32 %v858, %v944
  %946 = vmatmul.bf16.gmra.mxu0 %v907
  %v947 = vpop.f32.mrf.mxu0
  %v948 = vadd.f32 %v858, %v947
  %v949 = vpop.f32.mrf.mxu0
  %v950 = vadd.f32 %v858, %v949
  %951 = vmatmul.bf16.gmra.mxu0 %v910
  %v952 = vpop.f32.mrf.mxu0
  %v953 = vadd.f32 %v858, %v952
  %v954 = vpop.f32.mrf.mxu0
  %v955 = vadd.f32 %v858, %v954
  %956 = vmatmul.bf16.gmra.mxu0 %v913
  %v957 = vpop.f32.mrf.mxu0
  %v958 = vadd.f32 %v858, %v957
  %v959 = vpop.f32.mrf.mxu0
  %v960 = vadd.f32 %v858, %v959
  %961 = vmatmul.bf16.gmra.mxu0 %v916
  %v962 = vpop.f32.mrf.mxu0
  %v963 = vadd.f32 %v858, %v962
  %v964 = vpop.f32.mrf.mxu0
  %v965 = vadd.f32 %v858, %v964
  %966 = vmatmul.bf16.gmra.mxu0 %v919
  %v967 = vpop.f32.mrf.mxu0
  %v968 = vadd.f32 %v858, %v967
  %v969 = vpop.f32.mrf.mxu0
  %v970 = vadd.f32 %v858, %v969
  %971 = vmatmul.bf16.gmra.mxu0 %v922
  %v972 = vpop.f32.mrf.mxu0
  %v973 = vadd.f32 %v858, %v972
  %v974 = vpop.f32.mrf.mxu0
  %v975 = vadd.f32 %v858, %v974
  %976 = vdwg.mxu0
  %vm977 = vcmask 31744
  %978 = vst.msk [vmem:[%s15] sm:$0xff] %vm977, %v938
  %979 = vst.msk [vmem:[%s15 + $0x8] sm:$0xff] %vm977, %v940
  %980 = vst.msk [vmem:[%s15 + $0x10] sm:$0xff] %vm977, %v943
  %981 = vst.msk [vmem:[%s15 + $0x18] sm:$0xff] %vm977, %v945
  %982 = vst.msk [vmem:[%s15 + $0x20] sm:$0xff] %vm977, %v948
  %983 = vst.msk [vmem:[%s15 + $0x28] sm:$0xff] %vm977, %v950
  %984 = vst.msk [vmem:[%s15 + $0x30] sm:$0xff] %vm977, %v953
  %985 = vst.msk [vmem:[%s15 + $0x38] sm:$0xff] %vm977, %v955
  %986 = vst.msk [vmem:[%s15 + $0x40] sm:$0xff] %vm977, %v958
  %987 = vst.msk [vmem:[%s15 + $0x48] sm:$0xff] %vm977, %v960
  %988 = vst.msk [vmem:[%s15 + $0x50] sm:$0xff] %vm977, %v963
  %989 = vst.msk [vmem:[%s15 + $0x58] sm:$0xff] %vm977, %v965
  %990 = vst.msk [vmem:[%s15 + $0x60] sm:$0xff] %vm977, %v968
  %991 = vst.msk [vmem:[%s15 + $0x68] sm:$0xff] %vm977, %v970
  %992 = vst.msk [vmem:[%s15 + $0x70] sm:$0xff] %vm977, %v973
  %993 = vst.msk [vmem:[%s15 + $0x78] sm:$0xff] %vm977, %v975
  %v994 = vld [vmem:[%s1] sm:$0xff]
  %v995 = vld [vmem:[%s1 + $0x8] sm:$0xff]
  %v996 = vld [vmem:[%s1 + $0x10] sm:$0xff]
  %v997 = vld [vmem:[%s1 + $0x18] sm:$0xff]
  %v998 = vld [vmem:[%s1 + $0x20] sm:$0xff]
  %v999 = vld [vmem:[%s1 + $0x28] sm:$0xff]
  %v1000 = vld [vmem:[%s1 + $0x30] sm:$0xff]
  %v1001 = vld [vmem:[%s1 + $0x38] sm:$0xff]
  %v1002 = vld [vmem:[%s1 + $0x40] sm:$0xff]
  %v1003 = vld [vmem:[%s1 + $0x48] sm:$0xff]
  %v1004 = vld [vmem:[%s1 + $0x50] sm:$0xff]
  %v1005 = vld [vmem:[%s1 + $0x58] sm:$0xff]
  %v1006 = vld [vmem:[%s1 + $0x60] sm:$0xff]
  %v1007 = vld [vmem:[%s1 + $0x68] sm:$0xff]
  %v1008 = vld [vmem:[%s1 + $0x70] sm:$0xff]
  %v1009 = vld [vmem:[%s1 + $0x78] sm:$0xff]
  %1026 = vrot.lane.b32.xlu0 %v994, 2
  %v1027 = vpop.permute.xlu0 %1026
  %1028 = vrot.lane.b32.xlu0 %v995, 2
  %v1029 = vpop.permute.xlu0 %1028
  %1030 = vrot.lane.b32.xlu0 %v996, 2
  %v1031 = vpop.permute.xlu0 %1030
  %1032 = vrot.lane.b32.xlu0 %v997, 2
  %v1033 = vpop.permute.xlu0 %1032
  %1034 = vrot.lane.b32.xlu0 %v998, 2
  %v1035 = vpop.permute.xlu0 %1034
  %1036 = vrot.lane.b32.xlu0 %v999, 2
  %v1037 = vpop.permute.xlu0 %1036
  %1038 = vrot.lane.b32.xlu0 %v1000, 2
  %v1039 = vpop.permute.xlu0 %1038
  %1040 = vrot.lane.b32.xlu0 %v1001, 2
  %v1041 = vpop.permute.xlu0 %1040
  %1042 = vrot.lane.b32.xlu0 %v1002, 2
  %v1043 = vpop.permute.xlu0 %1042
  %1044 = vrot.lane.b32.xlu0 %v1003, 2
  %v1045 = vpop.permute.xlu0 %1044
  %1046 = vrot.lane.b32.xlu0 %v1004, 2
  %v1047 = vpop.permute.xlu0 %1046
  %1048 = vrot.lane.b32.xlu0 %v1005, 2
  %v1049 = vpop.permute.xlu0 %1048
  %1050 = vrot.lane.b32.xlu0 %v1006, 2
  %v1051 = vpop.permute.xlu0 %1050
  %1052 = vrot.lane.b32.xlu0 %v1007, 2
  %v1053 = vpop.permute.xlu0 %1052
  %1054 = vrot.lane.b32.xlu0 %v1008, 2
  %v1055 = vpop.permute.xlu0 %1054
  %1056 = vrot.lane.b32.xlu0 %v1009, 2
  %v1057 = vpop.permute.xlu0 %1056
  %v1074 = vmul.f32 %v938, %v1027
  %v1075 = vmul.f32 %v940, %v1029
  %v1076 = vmul.f32 %v943, %v1031
  %v1077 = vmul.f32 %v945, %v1033
  %v1078 = vmul.f32 %v948, %v1035
  %v1079 = vmul.f32 %v950, %v1037
  %v1080 = vmul.f32 %v953, %v1039
  %v1081 = vmul.f32 %v955, %v1041
  %v1082 = vmul.f32 %v958, %v1043
  %v1083 = vmul.f32 %v960, %v1045
  %v1084 = vmul.f32 %v963, %v1047
  %v1085 = vmul.f32 %v965, %v1049
  %v1086 = vmul.f32 %v968, %v1051
  %v1087 = vmul.f32 %v970, %v1053
  %v1088 = vmul.f32 %v973, %v1055
  %v1089 = vmul.f32 %v975, %v1057
  %1106 = vrot.lane.b32.xlu0 %v1074, 126
  %v1107 = vpop.permute.xlu0 %1106
  %1108 = vrot.lane.b32.xlu0 %v1075, 126
  %v1109 = vpop.permute.xlu0 %1108
  %1110 = vrot.lane.b32.xlu0 %v1076, 126
  %v1111 = vpop.permute.xlu0 %1110
  %1112 = vrot.lane.b32.xlu0 %v1077, 126
  %v1113 = vpop.permute.xlu0 %1112
  %1114 = vrot.lane.b32.xlu0 %v1078, 126
  %v1115 = vpop.permute.xlu0 %1114
  %1116 = vrot.lane.b32.xlu0 %v1079, 126
  %v1117 = vpop.permute.xlu0 %1116
  %1118 = vrot.lane.b32.xlu0 %v1080, 126
  %v1119 = vpop.permute.xlu0 %1118
  %1120 = vrot.lane.b32.xlu0 %v1081, 126
  %v1121 = vpop.permute.xlu0 %1120
  %1122 = vrot.lane.b32.xlu0 %v1082, 126
  %v1123 = vpop.permute.xlu0 %1122
  %1124 = vrot.lane.b32.xlu0 %v1083, 126
  %v1125 = vpop.permute.xlu0 %1124
  %1126 = vrot.lane.b32.xlu0 %v1084, 126
  %v1127 = vpop.permute.xlu0 %1126
  %1128 = vrot.lane.b32.xlu0 %v1085, 126
  %v1129 = vpop.permute.xlu0 %1128
  %1130 = vrot.lane.b32.xlu0 %v1086, 126
  %v1131 = vpop.permute.xlu0 %1130
  %1132 = vrot.lane.b32.xlu0 %v1087, 126
  %v1133 = vpop.permute.xlu0 %1132
  %1134 = vrot.lane.b32.xlu0 %v1088, 126
  %v1135 = vpop.permute.xlu0 %1134
  %1136 = vrot.lane.b32.xlu0 %v1089, 126
  %v1137 = vpop.permute.xlu0 %1136
  %v1154 = vadd.f32 %v938, %v1107
  %v1155 = vadd.f32 %v940, %v1109
  %v1156 = vadd.f32 %v943, %v1111
  %v1157 = vadd.f32 %v945, %v1113
  %v1158 = vadd.f32 %v948, %v1115
  %v1159 = vadd.f32 %v950, %v1117
  %v1160 = vadd.f32 %v953, %v1119
  %v1161 = vadd.f32 %v955, %v1121
  %v1162 = vadd.f32 %v958, %v1123
  %v1163 = vadd.f32 %v960, %v1125
  %v1164 = vadd.f32 %v963, %v1127
  %v1165 = vadd.f32 %v965, %v1129
  %v1166 = vadd.f32 %v968, %v1131
  %v1167 = vadd.f32 %v970, %v1133
  %v1168 = vadd.f32 %v973, %v1135
  %v1169 = vadd.f32 %v975, %v1137
  %v1170 = vld [vmem:[%s8] sm:$0x3]
  %1172 = vset.pattern.permute.xlu0 0
  %1173 = vperm.xlu0 %1172, %v1154
  %v1174 = vpop.permute.xlu0 %1173
  %1177 = vset.pattern.permute.xlu0 0
  %1178 = vperm.xlu0 %1177, %v1155
  %v1179 = vpop.permute.xlu0 %1178
  %1182 = vset.pattern.permute.xlu0 0
  %1183 = vperm.xlu0 %1182, %v1156
  %v1184 = vpop.permute.xlu0 %1183
  %1187 = vset.pattern.permute.xlu0 0
  %1188 = vperm.xlu0 %1187, %v1157
  %v1189 = vpop.permute.xlu0 %1188
  %1192 = vset.pattern.permute.xlu0 0
  %1193 = vperm.xlu0 %1192, %v1158
  %v1194 = vpop.permute.xlu0 %1193
  %1197 = vset.pattern.permute.xlu0 0
  %1198 = vperm.xlu0 %1197, %v1159
  %v1199 = vpop.permute.xlu0 %1198
  %1202 = vset.pattern.permute.xlu0 0
  %1203 = vperm.xlu0 %1202, %v1160
  %v1204 = vpop.permute.xlu0 %1203
  %1207 = vset.pattern.permute.xlu0 0
  %1208 = vperm.xlu0 %1207, %v1161
  %v1209 = vpop.permute.xlu0 %1208
  %1212 = vset.pattern.permute.xlu0 0
  %1213 = vperm.xlu0 %1212, %v1162
  %v1214 = vpop.permute.xlu0 %1213
  %1217 = vset.pattern.permute.xlu0 0
  %1218 = vperm.xlu0 %1217, %v1163
  %v1219 = vpop.permute.xlu0 %1218
  %1222 = vset.pattern.permute.xlu0 0
  %1223 = vperm.xlu0 %1222, %v1164
  %v1224 = vpop.permute.xlu0 %1223
  %1227 = vset.pattern.permute.xlu0 0
  %1228 = vperm.xlu0 %1227, %v1165
  %v1229 = vpop.permute.xlu0 %1228
  %1232 = vset.pattern.permute.xlu0 0
  %1233 = vperm.xlu0 %1232, %v1166
  %v1234 = vpop.permute.xlu0 %1233
  %1237 = vset.pattern.permute.xlu0 0
  %1238 = vperm.xlu0 %1237, %v1167
  %v1239 = vpop.permute.xlu0 %1238
  %1242 = vset.pattern.permute.xlu0 0
  %1243 = vperm.xlu0 %1242, %v1168
  %v1244 = vpop.permute.xlu0 %1243
  %1247 = vset.pattern.permute.xlu0 0
  %1248 = vperm.xlu0 %1247, %v1169
  %v1249 = vpop.permute.xlu0 %1248
  %v1251 = vperm.slane %v1170, 0
  %v1252 = vmul.f32 %v1174, %v1251
  %v1253 = vmul.f32 %v1179, %v1251
  %v1254 = vmul.f32 %v1184, %v1251
  %v1255 = vmul.f32 %v1189, %v1251
  %v1256 = vmul.f32 %v1194, %v1251
  %v1257 = vmul.f32 %v1199, %v1251
  %v1258 = vmul.f32 %v1204, %v1251
  %v1259 = vmul.f32 %v1209, %v1251
  %v1260 = vmul.f32 %v1214, %v1251
  %v1261 = vmul.f32 %v1219, %v1251
  %v1262 = vmul.f32 %v1224, %v1251
  %v1263 = vmul.f32 %v1229, %v1251
  %v1264 = vmul.f32 %v1234, %v1251
  %v1265 = vmul.f32 %v1239, %v1251
  %v1266 = vmul.f32 %v1244, %v1251
  %v1267 = vmul.f32 %v1249, %v1251
  %1268 = vset.pattern.permute.xlu0 1
  %1269 = vperm.xlu0 %1268, %v1154
  %v1270 = vpop.permute.xlu0 %1269
  %1272 = vset.pattern.permute.xlu0 1
  %1273 = vperm.xlu0 %1272, %v1155
  %v1274 = vpop.permute.xlu0 %1273
  %1276 = vset.pattern.permute.xlu0 1
  %1277 = vperm.xlu0 %1276, %v1156
  %v1278 = vpop.permute.xlu0 %1277
  %1280 = vset.pattern.permute.xlu0 1
  %1281 = vperm.xlu0 %1280, %v1157
  %v1282 = vpop.permute.xlu0 %1281
  %1284 = vset.pattern.permute.xlu0 1
  %1285 = vperm.xlu0 %1284, %v1158
  %v1286 = vpop.permute.xlu0 %1285
  %1288 = vset.pattern.permute.xlu0 1
  %1289 = vperm.xlu0 %1288, %v1159
  %v1290 = vpop.permute.xlu0 %1289
  %1292 = vset.pattern.permute.xlu0 1
  %1293 = vperm.xlu0 %1292, %v1160
  %v1294 = vpop.permute.xlu0 %1293
  %1296 = vset.pattern.permute.xlu0 1
  %1297 = vperm.xlu0 %1296, %v1161
  %v1298 = vpop.permute.xlu0 %1297
  %1300 = vset.pattern.permute.xlu0 1
  %1301 = vperm.xlu0 %1300, %v1162
  %v1302 = vpop.permute.xlu0 %1301
  %1304 = vset.pattern.permute.xlu0 1
  %1305 = vperm.xlu0 %1304, %v1163
  %v1306 = vpop.permute.xlu0 %1305
  %1308 = vset.pattern.permute.xlu0 1
  %1309 = vperm.xlu0 %1308, %v1164
  %v1310 = vpop.permute.xlu0 %1309
  %1312 = vset.pattern.permute.xlu0 1
  %1313 = vperm.xlu0 %1312, %v1165
  %v1314 = vpop.permute.xlu0 %1313
  %1316 = vset.pattern.permute.xlu0 1
  %1317 = vperm.xlu0 %1316, %v1166
  %v1318 = vpop.permute.xlu0 %1317
  %1320 = vset.pattern.permute.xlu0 1
  %1321 = vperm.xlu0 %1320, %v1167
  %v1322 = vpop.permute.xlu0 %1321
  %1324 = vset.pattern.permute.xlu0 1
  %1325 = vperm.xlu0 %1324, %v1168
  %v1326 = vpop.permute.xlu0 %1325
  %1328 = vset.pattern.permute.xlu0 1
  %1329 = vperm.xlu0 %1328, %v1169
  %v1330 = vpop.permute.xlu0 %1329
  %v1332 = vperm.slane %v1170, 1
  %v1333 = vmul.f32 %v1270, %v1332
  %v1334 = vmul.f32 %v1274, %v1332
  %v1335 = vmul.f32 %v1278, %v1332
  %v1336 = vmul.f32 %v1282, %v1332
  %v1337 = vmul.f32 %v1286, %v1332
  %v1338 = vmul.f32 %v1290, %v1332
  %v1339 = vmul.f32 %v1294, %v1332
  %v1340 = vmul.f32 %v1298, %v1332
  %v1341 = vmul.f32 %v1302, %v1332
  %v1342 = vmul.f32 %v1306, %v1332
  %v1343 = vmul.f32 %v1310, %v1332
  %v1344 = vmul.f32 %v1314, %v1332
  %v1345 = vmul.f32 %v1318, %v1332
  %v1346 = vmul.f32 %v1322, %v1332
  %v1347 = vmul.f32 %v1326, %v1332
  %v1348 = vmul.f32 %v1330, %v1332
  %v1349 = vadd.f32 %v1252, %v1333
  %v1350 = vadd.f32 %v1253, %v1334
  %v1351 = vadd.f32 %v1254, %v1335
  %v1352 = vadd.f32 %v1255, %v1336
  %v1353 = vadd.f32 %v1256, %v1337
  %v1354 = vadd.f32 %v1257, %v1338
  %v1355 = vadd.f32 %v1258, %v1339
  %v1356 = vadd.f32 %v1259, %v1340
  %v1357 = vadd.f32 %v1260, %v1341
  %v1358 = vadd.f32 %v1261, %v1342
  %v1359 = vadd.f32 %v1262, %v1343
  %v1360 = vadd.f32 %v1263, %v1344
  %v1361 = vadd.f32 %v1264, %v1345
  %v1362 = vadd.f32 %v1265, %v1346
  %v1363 = vadd.f32 %v1266, %v1347
  %v1364 = vadd.f32 %v1267, %v1348
  %v1365 = vld [vmem:[%s9] sm:$0x1]
  %v1367 = vperm.slane %v1365, 0
  %v1369 = vadd.f32 %v1349, %v1367
  %v1370 = vadd.f32 %v1350, %v1367
  %v1371 = vadd.f32 %v1351, %v1367
  %v1372 = vadd.f32 %v1352, %v1367
  %v1373 = vadd.f32 %v1353, %v1367
  %v1374 = vadd.f32 %v1354, %v1367
  %v1375 = vadd.f32 %v1355, %v1367
  %v1376 = vadd.f32 %v1356, %v1367
  %v1377 = vadd.f32 %v1357, %v1367
  %v1378 = vadd.f32 %v1358, %v1367
  %v1379 = vadd.f32 %v1359, %v1367
  %v1380 = vadd.f32 %v1360, %v1367
  %v1381 = vadd.f32 %v1361, %v1367
  %v1382 = vadd.f32 %v1362, %v1367
  %v1383 = vadd.f32 %v1363, %v1367
  %v1384 = vadd.f32 %v1364, %v1367
  %v1385 = vmax.f32 %v1369, 0.0
  %v1386 = vmax.f32 %v1370, 0.0
  %v1387 = vmax.f32 %v1371, 0.0
  %v1388 = vmax.f32 %v1372, 0.0
  %v1389 = vmax.f32 %v1373, 0.0
  %v1390 = vmax.f32 %v1374, 0.0
  %v1391 = vmax.f32 %v1375, 0.0
  %v1392 = vmax.f32 %v1376, 0.0
  %v1393 = vmax.f32 %v1377, 0.0
  %v1394 = vmax.f32 %v1378, 0.0
  %v1395 = vmax.f32 %v1379, 0.0
  %v1396 = vmax.f32 %v1380, 0.0
  %v1397 = vmax.f32 %v1381, 0.0
  %v1398 = vmax.f32 %v1382, 0.0
  %v1399 = vmax.f32 %v1383, 0.0
  %v1400 = vmax.f32 %v1384, 0.0
  %v1401 = vpack.c.bf16 %v1386, %v1385
  %v1402 = vpack.c.bf16 %v1388, %v1387
  %v1403 = vpack.c.bf16 %v1390, %v1389
  %v1404 = vpack.c.bf16 %v1392, %v1391
  %v1405 = vpack.c.bf16 %v1394, %v1393
  %v1406 = vpack.c.bf16 %v1396, %v1395
  %v1407 = vpack.c.bf16 %v1398, %v1397
  %v1408 = vpack.c.bf16 %v1400, %v1399
  %v1409 = vld [vmem:[%s10] sm:$0xff]
  %v1410 = vld [vmem:[%s10 + $0x8] sm:$0xff]
  %v1411 = vld [vmem:[%s10 + $0x10] sm:$0xff]
  %v1412 = vld [vmem:[%s10 + $0x18] sm:$0xff]
  %v1413 = vld [vmem:[%s10 + $0x20] sm:$0xff]
  %v1414 = vld [vmem:[%s10 + $0x28] sm:$0xff]
  %v1415 = vld [vmem:[%s10 + $0x30] sm:$0xff]
  %v1416 = vld [vmem:[%s10 + $0x38] sm:$0xff]
  %v1417 = vld [vmem:[%s10 + $0x40] sm:$0xff]
  %v1418 = vld [vmem:[%s10 + $0x48] sm:$0xff]
  %v1419 = vld [vmem:[%s10 + $0x50] sm:$0xff]
  %v1420 = vld [vmem:[%s10 + $0x58] sm:$0xff]
  %v1421 = vld [vmem:[%s10 + $0x60] sm:$0x33]
  %v1422 = vld [vmem:[%s11] sm:$0x3]
  %v1424 = vperm.slane %v1422, 0
  %v1425 = vperm.slane %v1422, 1
  %v1441 = vunpack.c.l.b16 %v1409
  %v1442 = vunpack.c.h.b16 %v1409
  %v1443 = vunpack.c.l.b16 %v1410
  %v1444 = vunpack.c.h.b16 %v1410
  %v1445 = vunpack.c.l.b16 %v1411
  %v1446 = vunpack.c.h.b16 %v1411
  %v1447 = vunpack.c.l.b16 %v1412
  %v1448 = vunpack.c.h.b16 %v1412
  %v1449 = vunpack.c.l.b16 %v1413
  %v1450 = vunpack.c.h.b16 %v1413
  %v1451 = vunpack.c.l.b16 %v1414
  %v1452 = vunpack.c.h.b16 %v1414
  %v1453 = vunpack.c.l.b16 %v1415
  %v1454 = vunpack.c.h.b16 %v1415
  %v1455 = vunpack.c.l.b16 %v1416
  %v1456 = vunpack.c.h.b16 %v1416
  %v1457 = vunpack.c.l.b16 %v1417
  %v1458 = vunpack.c.h.b16 %v1417
  %v1459 = vunpack.c.l.b16 %v1418
  %v1460 = vunpack.c.h.b16 %v1418
  %v1461 = vunpack.c.l.b16 %v1419
  %v1462 = vunpack.c.h.b16 %v1419
  %v1463 = vunpack.c.l.b16 %v1420
  %v1464 = vunpack.c.h.b16 %v1420
  %v1465 = vunpack.c.l.b16 %v1421
  %v1466 = vunpack.c.h.b16 %v1421
  %v1467 = vpack.c.b16 %v1443, %v1441
  %v1468 = vpack.c.b16 %v1444, %v1442
  %v1469 = vpack.c.b16 %v1447, %v1445
  %v1470 = vpack.c.b16 %v1448, %v1446
  %v1471 = vpack.c.b16 %v1451, %v1449
  %v1472 = vpack.c.b16 %v1452, %v1450
  %v1473 = vpack.c.b16 %v1455, %v1453
  %v1474 = vpack.c.b16 %v1456, %v1454
  %v1475 = vpack.c.b16 %v1459, %v1457
  %v1476 = vpack.c.b16 %v1460, %v1458
  %v1477 = vpack.c.b16 %v1463, %v1461
  %v1478 = vpack.c.b16 %v1464, %v1462
  %v1479 = vpack.c.b16 %v1465, %v1465
  %v1480 = vpack.c.b16 %v1466, %v1466
  %v1494 = vsel %vm899, %v1401, 0
  %v1497 = vsel %vm899, %v1402, 0
  %v1500 = vsel %vm899, %v1403, 0
  %v1503 = vsel %vm899, %v1404, 0
  %v1506 = vsel %vm899, %v1405, 0
  %v1509 = vsel %vm899, %v1406, 0
  %v1512 = vsel %vm899, %v1407, 0
  %v1515 = vsel %vm899, %v1408, 0
  %v1518 = vsel %vm924, %v1479, 0
  %v1521 = vsel %vm924, %v1480, 0
  %1523 = vmatpush.bf16.msra.mxu0 0
  %1524 = vmatpush.bf16.msra.mxu0 %v1518
  %1525 = vmatpush.bf16.msra.mxu0 %v1477
  %1526 = vmatpush.bf16.msra.mxu0 %v1475
  %1527 = vmatpush.bf16.msra.mxu0 %v1473
  %1528 = vmatpush.bf16.msra.mxu0 %v1471
  %1529 = vmatpush.bf16.msra.mxu0 %v1469
  %1530 = vmatpush.bf16.msra.mxu0 %v1467
  %1531 = vmatmul.bf16.gmra.mxu0 %v1494
  %v1532 = vpop.f32.mrf.mxu0
  %v1533 = vadd.f32 %v1424, %v1532
  %v1534 = vpop.f32.mrf.mxu0
  %v1535 = vadd.f32 %v1424, %v1534
  %1536 = vmatmul.bf16.gmra.mxu0 %v1497
  %v1537 = vpop.f32.mrf.mxu0
  %v1538 = vadd.f32 %v1424, %v1537
  %v1539 = vpop.f32.mrf.mxu0
  %v1540 = vadd.f32 %v1424, %v1539
  %1541 = vmatmul.bf16.gmra.mxu0 %v1500
  %v1542 = vpop.f32.mrf.mxu0
  %v1543 = vadd.f32 %v1424, %v1542
  %v1544 = vpop.f32.mrf.mxu0
  %v1545 = vadd.f32 %v1424, %v1544
  %1546 = vmatmul.bf16.gmra.mxu0 %v1503
  %v1547 = vpop.f32.mrf.mxu0
  %v1548 = vadd.f32 %v1424, %v1547
  %v1549 = vpop.f32.mrf.mxu0
  %v1550 = vadd.f32 %v1424, %v1549
  %1551 = vmatmul.bf16.gmra.mxu0 %v1506
  %v1552 = vpop.f32.mrf.mxu0
  %v1553 = vadd.f32 %v1424, %v1552
  %v1554 = vpop.f32.mrf.mxu0
  %v1555 = vadd.f32 %v1424, %v1554
  %1556 = vmatmul.bf16.gmra.mxu0 %v1509
  %v1557 = vpop.f32.mrf.mxu0
  %v1558 = vadd.f32 %v1424, %v1557
  %v1559 = vpop.f32.mrf.mxu0
  %v1560 = vadd.f32 %v1424, %v1559
  %1561 = vmatmul.bf16.gmra.mxu0 %v1512
  %v1562 = vpop.f32.mrf.mxu0
  %v1563 = vadd.f32 %v1424, %v1562
  %v1564 = vpop.f32.mrf.mxu0
  %v1565 = vadd.f32 %v1424, %v1564
  %1566 = vmatmul.bf16.gmra.mxu0 %v1515
  %v1567 = vpop.f32.mrf.mxu0
  %v1568 = vadd.f32 %v1424, %v1567
  %v1569 = vpop.f32.mrf.mxu0
  %v1570 = vadd.f32 %v1424, %v1569
  %1571 = vdwg.mxu0
  %1572 = vmatpush.bf16.msra.mxu0 0
  %1573 = vmatpush.bf16.msra.mxu0 %v1521
  %1574 = vmatpush.bf16.msra.mxu0 %v1478
  %1575 = vmatpush.bf16.msra.mxu0 %v1476
  %1576 = vmatpush.bf16.msra.mxu0 %v1474
  %1577 = vmatpush.bf16.msra.mxu0 %v1472
  %1578 = vmatpush.bf16.msra.mxu0 %v1470
  %1579 = vmatpush.bf16.msra.mxu0 %v1468
  %1580 = vmatmul.bf16.gmra.mxu0 %v1494
  %v1581 = vpop.f32.mrf.mxu0
  %v1582 = vadd.f32 %v1425, %v1581
  %v1583 = vpop.f32.mrf.mxu0
  %v1584 = vadd.f32 %v1425, %v1583
  %1585 = vmatmul.bf16.gmra.mxu0 %v1497
  %v1586 = vpop.f32.mrf.mxu0
  %v1587 = vadd.f32 %v1425, %v1586
  %v1588 = vpop.f32.mrf.mxu0
  %v1589 = vadd.f32 %v1425, %v1588
  %1590 = vmatmul.bf16.gmra.mxu0 %v1500
  %v1591 = vpop.f32.mrf.mxu0
  %v1592 = vadd.f32 %v1425, %v1591
  %v1593 = vpop.f32.mrf.mxu0
  %v1594 = vadd.f32 %v1425, %v1593
  %1595 = vmatmul.bf16.gmra.mxu0 %v1503
  %v1596 = vpop.f32.mrf.mxu0
  %v1597 = vadd.f32 %v1425, %v1596
  %v1598 = vpop.f32.mrf.mxu0
  %v1599 = vadd.f32 %v1425, %v1598
  %1600 = vmatmul.bf16.gmra.mxu0 %v1506
  %v1601 = vpop.f32.mrf.mxu0
  %v1602 = vadd.f32 %v1425, %v1601
  %v1603 = vpop.f32.mrf.mxu0
  %v1604 = vadd.f32 %v1425, %v1603
  %1605 = vmatmul.bf16.gmra.mxu0 %v1509
  %v1606 = vpop.f32.mrf.mxu0
  %v1607 = vadd.f32 %v1425, %v1606
  %v1608 = vpop.f32.mrf.mxu0
  %v1609 = vadd.f32 %v1425, %v1608
  %1610 = vmatmul.bf16.gmra.mxu0 %v1512
  %v1611 = vpop.f32.mrf.mxu0
  %v1612 = vadd.f32 %v1425, %v1611
  %v1613 = vpop.f32.mrf.mxu0
  %v1614 = vadd.f32 %v1425, %v1613
  %1615 = vmatmul.bf16.gmra.mxu0 %v1515
  %v1616 = vpop.f32.mrf.mxu0
  %v1617 = vadd.f32 %v1425, %v1616
  %v1618 = vpop.f32.mrf.mxu0
  %v1619 = vadd.f32 %v1425, %v1618
  %1620 = vdwg.mxu0
  %v1621 = vmax.f32 %v1533, 0.0
  %v1622 = vmax.f32 %v1582, 0.0
  %v1623 = vmax.f32 %v1535, 0.0
  %v1624 = vmax.f32 %v1584, 0.0
  %v1625 = vmax.f32 %v1538, 0.0
  %v1626 = vmax.f32 %v1587, 0.0
  %v1627 = vmax.f32 %v1540, 0.0
  %v1628 = vmax.f32 %v1589, 0.0
  %v1629 = vmax.f32 %v1543, 0.0
  %v1630 = vmax.f32 %v1592, 0.0
  %v1631 = vmax.f32 %v1545, 0.0
  %v1632 = vmax.f32 %v1594, 0.0
  %v1633 = vmax.f32 %v1548, 0.0
  %v1634 = vmax.f32 %v1597, 0.0
  %v1635 = vmax.f32 %v1550, 0.0
  %v1636 = vmax.f32 %v1599, 0.0
  %v1637 = vmax.f32 %v1553, 0.0
  %v1638 = vmax.f32 %v1602, 0.0
  %v1639 = vmax.f32 %v1555, 0.0
  %v1640 = vmax.f32 %v1604, 0.0
  %v1641 = vmax.f32 %v1558, 0.0
  %v1642 = vmax.f32 %v1607, 0.0
  %v1643 = vmax.f32 %v1560, 0.0
  %v1644 = vmax.f32 %v1609, 0.0
  %v1645 = vmax.f32 %v1563, 0.0
  %v1646 = vmax.f32 %v1612, 0.0
  %v1647 = vmax.f32 %v1565, 0.0
  %v1648 = vmax.f32 %v1614, 0.0
  %v1649 = vmax.f32 %v1568, 0.0
  %v1650 = vmax.f32 %v1617, 0.0
  %v1651 = vmax.f32 %v1570, 0.0
  %v1652 = vmax.f32 %v1619, 0.0
  %v1653 = vpack.c.bf16 %v1623, %v1621
  %v1654 = vpack.c.bf16 %v1624, %v1622
  %v1655 = vpack.c.bf16 %v1627, %v1625
  %v1656 = vpack.c.bf16 %v1628, %v1626
  %v1657 = vpack.c.bf16 %v1631, %v1629
  %v1658 = vpack.c.bf16 %v1632, %v1630
  %v1659 = vpack.c.bf16 %v1635, %v1633
  %v1660 = vpack.c.bf16 %v1636, %v1634
  %v1661 = vpack.c.bf16 %v1639, %v1637
  %v1662 = vpack.c.bf16 %v1640, %v1638
  %v1663 = vpack.c.bf16 %v1643, %v1641
  %v1664 = vpack.c.bf16 %v1644, %v1642
  %v1665 = vpack.c.bf16 %v1647, %v1645
  %v1666 = vpack.c.bf16 %v1648, %v1646
  %v1667 = vpack.c.bf16 %v1651, %v1649
  %v1668 = vpack.c.bf16 %v1652, %v1650
  %v1669 = vld [vmem:[%s12] sm:$0xff]
  %v1670 = vld [vmem:[%s12 + $0x8] sm:$0xff]
  %v1671 = vld [vmem:[%s12 + $0x10] sm:$0xff]
  %v1672 = vld [vmem:[%s12 + $0x18] sm:$0xff]
  %v1673 = vld [vmem:[%s12 + $0x20] sm:$0xff]
  %v1674 = vld [vmem:[%s12 + $0x28] sm:$0xff]
  %v1675 = vld [vmem:[%s12 + $0x30] sm:$0xff]
  %v1676 = vld [vmem:[%s12 + $0x38] sm:$0xff]
  %v1677 = vld [vmem:[%s12 + $0x40] sm:$0xff]
  %v1678 = vld [vmem:[%s12 + $0x48] sm:$0xff]
  %v1679 = vld [vmem:[%s12 + $0x50] sm:$0xff]
  %v1680 = vld [vmem:[%s12 + $0x58] sm:$0xff]
  %v1681 = vld [vmem:[%s12 + $0x60] sm:$0xff]
  %v1682 = vld [vmem:[%s12 + $0x68] sm:$0xff]
  %v1683 = vld [vmem:[%s12 + $0x70] sm:$0xff]
  %v1684 = vld [vmem:[%s12 + $0x78] sm:$0xff]
  %v1685 = vld [vmem:[%s12 + $0x80] sm:$0xff]
  %v1686 = vld [vmem:[%s12 + $0x88] sm:$0xff]
  %v1687 = vld [vmem:[%s12 + $0x90] sm:$0xff]
  %v1688 = vld [vmem:[%s12 + $0x98] sm:$0xff]
  %v1689 = vld [vmem:[%s12 + $0xa0] sm:$0xff]
  %v1690 = vld [vmem:[%s12 + $0xa8] sm:$0xff]
  %v1691 = vld [vmem:[%s12 + $0xb0] sm:$0xff]
  %v1692 = vld [vmem:[%s12 + $0xb8] sm:$0xff]
  %v1693 = vld [vmem:[%s12 + $0xc0] sm:$0xff]
  %v1694 = vld [vmem:[%s13] sm:$0x3]
  %v1696 = vperm.slane %v1694, 0
  %v1697 = vperm.slane %v1694, 1
  %v1725 = vunpack.c.l.b16 %v1669
  %v1726 = vunpack.c.h.b16 %v1669
  %v1727 = vunpack.c.l.b16 %v1670
  %v1728 = vunpack.c.h.b16 %v1670
  %v1729 = vunpack.c.l.b16 %v1671
  %v1730 = vunpack.c.h.b16 %v1671
  %v1731 = vunpack.c.l.b16 %v1672
  %v1732 = vunpack.c.h.b16 %v1672
  %v1733 = vunpack.c.l.b16 %v1673
  %v1734 = vunpack.c.h.b16 %v1673
  %v1735 = vunpack.c.l.b16 %v1674
  %v1736 = vunpack.c.h.b16 %v1674
  %v1737 = vunpack.c.l.b16 %v1675
  %v1738 = vunpack.c.h.b16 %v1675
  %v1739 = vunpack.c.l.b16 %v1676
  %v1740 = vunpack.c.h.b16 %v1676
  %v1741 = vunpack.c.l.b16 %v1677
  %v1742 = vunpack.c.h.b16 %v1677
  %v1743 = vunpack.c.l.b16 %v1678
  %v1744 = vunpack.c.h.b16 %v1678
  %v1745 = vunpack.c.l.b16 %v1679
  %v1746 = vunpack.c.h.b16 %v1679
  %v1747 = vunpack.c.l.b16 %v1680
  %v1748 = vunpack.c.h.b16 %v1680
  %v1749 = vunpack.c.l.b16 %v1681
  %v1750 = vunpack.c.h.b16 %v1681
  %v1751 = vunpack.c.l.b16 %v1682
  %v1752 = vunpack.c.h.b16 %v1682
  %v1753 = vunpack.c.l.b16 %v1683
  %v1754 = vunpack.c.h.b16 %v1683
  %v1755 = vunpack.c.l.b16 %v1684
  %v1756 = vunpack.c.h.b16 %v1684
  %v1757 = vunpack.c.l.b16 %v1685
  %v1758 = vunpack.c.h.b16 %v1685
  %v1759 = vunpack.c.l.b16 %v1686
  %v1760 = vunpack.c.h.b16 %v1686
  %v1761 = vunpack.c.l.b16 %v1687
  %v1762 = vunpack.c.h.b16 %v1687
  %v1763 = vunpack.c.l.b16 %v1688
  %v1764 = vunpack.c.h.b16 %v1688
  %v1765 = vunpack.c.l.b16 %v1689
  %v1766 = vunpack.c.h.b16 %v1689
  %v1767 = vunpack.c.l.b16 %v1690
  %v1768 = vunpack.c.h.b16 %v1690
  %v1769 = vunpack.c.l.b16 %v1691
  %v1770 = vunpack.c.h.b16 %v1691
  %v1771 = vunpack.c.l.b16 %v1692
  %v1772 = vunpack.c.h.b16 %v1692
  %v1773 = vunpack.c.l.b16 %v1693
  %v1774 = vunpack.c.h.b16 %v1693
  %v1775 = vpack.c.b16 %v1727, %v1725
  %v1776 = vpack.c.b16 %v1728, %v1726
  %v1777 = vpack.c.b16 %v1731, %v1729
  %v1778 = vpack.c.b16 %v1732, %v1730
  %v1779 = vpack.c.b16 %v1735, %v1733
  %v1780 = vpack.c.b16 %v1736, %v1734
  %v1781 = vpack.c.b16 %v1739, %v1737
  %v1782 = vpack.c.b16 %v1740, %v1738
  %v1783 = vpack.c.b16 %v1743, %v1741
  %v1784 = vpack.c.b16 %v1744, %v1742
  %v1785 = vpack.c.b16 %v1747, %v1745
  %v1786 = vpack.c.b16 %v1748, %v1746
  %v1787 = vpack.c.b16 %v1751, %v1749
  %v1788 = vpack.c.b16 %v1752, %v1750
  %v1789 = vpack.c.b16 %v1755, %v1753
  %v1790 = vpack.c.b16 %v1756, %v1754
  %v1791 = vpack.c.b16 %v1759, %v1757
  %v1792 = vpack.c.b16 %v1760, %v1758
  %v1793 = vpack.c.b16 %v1763, %v1761
  %v1794 = vpack.c.b16 %v1764, %v1762
  %v1795 = vpack.c.b16 %v1767, %v1765
  %v1796 = vpack.c.b16 %v1768, %v1766
  %v1797 = vpack.c.b16 %v1771, %v1769
  %v1798 = vpack.c.b16 %v1772, %v1770
  %v1799 = vpack.c.b16 %v1773, %v1773
  %v1800 = vpack.c.b16 %v1774, %v1774
  %v1826 = vsel %vm692, %v1654, 0
  %v1829 = vsel %vm692, %v1656, 0
  %v1832 = vsel %vm692, %v1658, 0
  %v1835 = vsel %vm692, %v1660, 0
  %v1838 = vsel %vm692, %v1662, 0
  %v1841 = vsel %vm692, %v1664, 0
  %v1844 = vsel %vm692, %v1666, 0
  %v1847 = vsel %vm692, %v1668, 0
  %v1850 = vsel %vm717, %v1799, 0
  %v1853 = vsel %vm717, %v1800, 0
  %1855 = vmatpush.bf16.msra.mxu0 %v1789
  %1856 = vmatpush.bf16.msra.mxu0 %v1787
  %1857 = vmatpush.bf16.msra.mxu0 %v1785
  %1858 = vmatpush.bf16.msra.mxu0 %v1783
  %1859 = vmatpush.bf16.msra.mxu0 %v1781
  %1860 = vmatpush.bf16.msra.mxu0 %v1779
  %1861 = vmatpush.bf16.msra.mxu0 %v1777
  %1862 = vmatpush.bf16.msra.mxu0 %v1775
  %1863 = vmatmul.bf16.gmra.mxu0 %v1653
  %v1864 = vpop.f32.mrf.mxu0
  %v1865 = vadd.f32 %v1696, %v1864
  %v1866 = vpop.f32.mrf.mxu0
  %v1867 = vadd.f32 %v1696, %v1866
  %1868 = vmatmul.bf16.gmra.mxu0 %v1655
  %v1869 = vpop.f32.mrf.mxu0
  %v1870 = vadd.f32 %v1696, %v1869
  %v1871 = vpop.f32.mrf.mxu0
  %v1872 = vadd.f32 %v1696, %v1871
  %1873 = vmatmul.bf16.gmra.mxu0 %v1657
  %v1874 = vpop.f32.mrf.mxu0
  %v1875 = vadd.f32 %v1696, %v1874
  %v1876 = vpop.f32.mrf.mxu0
  %v1877 = vadd.f32 %v1696, %v1876
  %1878 = vmatmul.bf16.gmra.mxu0 %v1659
  %v1879 = vpop.f32.mrf.mxu0
  %v1880 = vadd.f32 %v1696, %v1879
  %v1881 = vpop.f32.mrf.mxu0
  %v1882 = vadd.f32 %v1696, %v1881
  %1883 = vmatmul.bf16.gmra.mxu0 %v1661
  %v1884 = vpop.f32.mrf.mxu0
  %v1885 = vadd.f32 %v1696, %v1884
  %v1886 = vpop.f32.mrf.mxu0
  %v1887 = vadd.f32 %v1696, %v1886
  %1888 = vmatmul.bf16.gmra.mxu0 %v1663
  %v1889 = vpop.f32.mrf.mxu0
  %v1890 = vadd.f32 %v1696, %v1889
  %v1891 = vpop.f32.mrf.mxu0
  %v1892 = vadd.f32 %v1696, %v1891
  %1893 = vmatmul.bf16.gmra.mxu0 %v1665
  %v1894 = vpop.f32.mrf.mxu0
  %v1895 = vadd.f32 %v1696, %v1894
  %v1896 = vpop.f32.mrf.mxu0
  %v1897 = vadd.f32 %v1696, %v1896
  %1898 = vmatmul.bf16.gmra.mxu0 %v1667
  %v1899 = vpop.f32.mrf.mxu0
  %v1900 = vadd.f32 %v1696, %v1899
  %v1901 = vpop.f32.mrf.mxu0
  %v1902 = vadd.f32 %v1696, %v1901
  %1903 = vdwg.mxu0
  %1904 = vmatpush.bf16.msra.mxu0 0
  %1905 = vmatpush.bf16.msra.mxu0 0
  %1906 = vmatpush.bf16.msra.mxu0 0
  %1907 = vmatpush.bf16.msra.mxu0 %v1850
  %1908 = vmatpush.bf16.msra.mxu0 %v1797
  %1909 = vmatpush.bf16.msra.mxu0 %v1795
  %1910 = vmatpush.bf16.msra.mxu0 %v1793
  %1911 = vmatpush.bf16.msra.mxu0 %v1791
  %1912 = vmatmul.bf16.gmra.mxu0 %v1826
  %v1913 = vpop.f32.mrf.mxu0
  %v1914 = vadd.f32 %v1865, %v1913
  %v1915 = vpop.f32.mrf.mxu0
  %v1916 = vadd.f32 %v1867, %v1915
  %1917 = vmatmul.bf16.gmra.mxu0 %v1829
  %v1918 = vpop.f32.mrf.mxu0
  %v1919 = vadd.f32 %v1870, %v1918
  %v1920 = vpop.f32.mrf.mxu0
  %v1921 = vadd.f32 %v1872, %v1920
  %1922 = vmatmul.bf16.gmra.mxu0 %v1832
  %v1923 = vpop.f32.mrf.mxu0
  %v1924 = vadd.f32 %v1875, %v1923
  %v1925 = vpop.f32.mrf.mxu0
  %v1926 = vadd.f32 %v1877, %v1925
  %1927 = vmatmul.bf16.gmra.mxu0 %v1835
  %v1928 = vpop.f32.mrf.mxu0
  %v1929 = vadd.f32 %v1880, %v1928
  %v1930 = vpop.f32.mrf.mxu0
  %v1931 = vadd.f32 %v1882, %v1930
  %1932 = vmatmul.bf16.gmra.mxu0 %v1838
  %v1933 = vpop.f32.mrf.mxu0
  %v1934 = vadd.f32 %v1885, %v1933
  %v1935 = vpop.f32.mrf.mxu0
  %v1936 = vadd.f32 %v1887, %v1935
  %1937 = vmatmul.bf16.gmra.mxu0 %v1841
  %v1938 = vpop.f32.mrf.mxu0
  %v1939 = vadd.f32 %v1890, %v1938
  %v1940 = vpop.f32.mrf.mxu0
  %v1941 = vadd.f32 %v1892, %v1940
  %1942 = vmatmul.bf16.gmra.mxu0 %v1844
  %v1943 = vpop.f32.mrf.mxu0
  %v1944 = vadd.f32 %v1895, %v1943
  %v1945 = vpop.f32.mrf.mxu0
  %v1946 = vadd.f32 %v1897, %v1945
  %1947 = vmatmul.bf16.gmra.mxu0 %v1847
  %v1948 = vpop.f32.mrf.mxu0
  %v1949 = vadd.f32 %v1900, %v1948
  %v1950 = vpop.f32.mrf.mxu0
  %v1951 = vadd.f32 %v1902, %v1950
  %1952 = vdwg.mxu0
  %1953 = vmatpush.bf16.msra.mxu0 %v1790
  %1954 = vmatpush.bf16.msra.mxu0 %v1788
  %1955 = vmatpush.bf16.msra.mxu0 %v1786
  %1956 = vmatpush.bf16.msra.mxu0 %v1784
  %1957 = vmatpush.bf16.msra.mxu0 %v1782
  %1958 = vmatpush.bf16.msra.mxu0 %v1780
  %1959 = vmatpush.bf16.msra.mxu0 %v1778
  %1960 = vmatpush.bf16.msra.mxu0 %v1776
  %1961 = vmatmul.bf16.gmra.mxu0 %v1653
  %v1962 = vpop.f32.mrf.mxu0
  %v1963 = vadd.f32 %v1697, %v1962
  %v1964 = vpop.f32.mrf.mxu0
  %v1965 = vadd.f32 %v1697, %v1964
  %1966 = vmatmul.bf16.gmra.mxu0 %v1655
  %v1967 = vpop.f32.mrf.mxu0
  %v1968 = vadd.f32 %v1697, %v1967
  %v1969 = vpop.f32.mrf.mxu0
  %v1970 = vadd.f32 %v1697, %v1969
  %1971 = vmatmul.bf16.gmra.mxu0 %v1657
  %v1972 = vpop.f32.mrf.mxu0
  %v1973 = vadd.f32 %v1697, %v1972
  %v1974 = vpop.f32.mrf.mxu0
  %v1975 = vadd.f32 %v1697, %v1974
  %1976 = vmatmul.bf16.gmra.mxu0 %v1659
  %v1977 = vpop.f32.mrf.mxu0
  %v1978 = vadd.f32 %v1697, %v1977
  %v1979 = vpop.f32.mrf.mxu0
  %v1980 = vadd.f32 %v1697, %v1979
  %1981 = vmatmul.bf16.gmra.mxu0 %v1661
  %v1982 = vpop.f32.mrf.mxu0
  %v1983 = vadd.f32 %v1697, %v1982
  %v1984 = vpop.f32.mrf.mxu0
  %v1985 = vadd.f32 %v1697, %v1984
  %1986 = vmatmul.bf16.gmra.mxu0 %v1663
  %v1987 = vpop.f32.mrf.mxu0
  %v1988 = vadd.f32 %v1697, %v1987
  %v1989 = vpop.f32.mrf.mxu0
  %v1990 = vadd.f32 %v1697, %v1989
  %1991 = vmatmul.bf16.gmra.mxu0 %v1665
  %v1992 = vpop.f32.mrf.mxu0
  %v1993 = vadd.f32 %v1697, %v1992
  %v1994 = vpop.f32.mrf.mxu0
  %v1995 = vadd.f32 %v1697, %v1994
  %1996 = vmatmul.bf16.gmra.mxu0 %v1667
  %v1997 = vpop.f32.mrf.mxu0
  %v1998 = vadd.f32 %v1697, %v1997
  %v1999 = vpop.f32.mrf.mxu0
  %v2000 = vadd.f32 %v1697, %v1999
  %2001 = vdwg.mxu0
  %2002 = vmatpush.bf16.msra.mxu0 0
  %2003 = vmatpush.bf16.msra.mxu0 0
  %2004 = vmatpush.bf16.msra.mxu0 0
  %2005 = vmatpush.bf16.msra.mxu0 %v1853
  %2006 = vmatpush.bf16.msra.mxu0 %v1798
  %2007 = vmatpush.bf16.msra.mxu0 %v1796
  %2008 = vmatpush.bf16.msra.mxu0 %v1794
  %2009 = vmatpush.bf16.msra.mxu0 %v1792
  %2010 = vmatmul.bf16.gmra.mxu0 %v1826
  %v2011 = vpop.f32.mrf.mxu0
  %v2012 = vadd.f32 %v1963, %v2011
  %v2013 = vpop.f32.mrf.mxu0
  %v2014 = vadd.f32 %v1965, %v2013
  %2015 = vmatmul.bf16.gmra.mxu0 %v1829
  %v2016 = vpop.f32.mrf.mxu0
  %v2017 = vadd.f32 %v1968, %v2016
  %v2018 = vpop.f32.mrf.mxu0
  %v2019 = vadd.f32 %v1970, %v2018
  %2020 = vmatmul.bf16.gmra.mxu0 %v1832
  %v2021 = vpop.f32.mrf.mxu0
  %v2022 = vadd.f32 %v1973, %v2021
  %v2023 = vpop.f32.mrf.mxu0
  %v2024 = vadd.f32 %v1975, %v2023
  %2025 = vmatmul.bf16.gmra.mxu0 %v1835
  %v2026 = vpop.f32.mrf.mxu0
  %v2027 = vadd.f32 %v1978, %v2026
  %v2028 = vpop.f32.mrf.mxu0
  %v2029 = vadd.f32 %v1980, %v2028
  %2030 = vmatmul.bf16.gmra.mxu0 %v1838
  %v2031 = vpop.f32.mrf.mxu0
  %v2032 = vadd.f32 %v1983, %v2031
  %v2033 = vpop.f32.mrf.mxu0
  %v2034 = vadd.f32 %v1985, %v2033
  %2035 = vmatmul.bf16.gmra.mxu0 %v1841
  %v2036 = vpop.f32.mrf.mxu0
  %v2037 = vadd.f32 %v1988, %v2036
  %v2038 = vpop.f32.mrf.mxu0
  %v2039 = vadd.f32 %v1990, %v2038
  %2040 = vmatmul.bf16.gmra.mxu0 %v1844
  %v2041 = vpop.f32.mrf.mxu0
  %v2042 = vadd.f32 %v1993, %v2041
  %v2043 = vpop.f32.mrf.mxu0
  %v2044 = vadd.f32 %v1995, %v2043
  %2045 = vmatmul.bf16.gmra.mxu0 %v1847
  %v2046 = vpop.f32.mrf.mxu0
  %v2047 = vadd.f32 %v1998, %v2046
  %v2048 = vpop.f32.mrf.mxu0
  %v2049 = vadd.f32 %v2000, %v2048
  %2050 = vdwg.mxu0
  %v2051 = vsub.f32 0.0, %v1914
  %v2052 = vsub.f32 0.0, %v2012
  %v2053 = vsub.f32 0.0, %v1916
  %v2054 = vsub.f32 0.0, %v2014
  %v2055 = vsub.f32 0.0, %v1919
  %v2056 = vsub.f32 0.0, %v2017
  %v2057 = vsub.f32 0.0, %v1921
  %v2058 = vsub.f32 0.0, %v2019
  %v2059 = vsub.f32 0.0, %v1924
  %v2060 = vsub.f32 0.0, %v2022
  %v2061 = vsub.f32 0.0, %v1926
  %v2062 = vsub.f32 0.0, %v2024
  %v2063 = vsub.f32 0.0, %v1929
  %v2064 = vsub.f32 0.0, %v2027
  %v2065 = vsub.f32 0.0, %v1931
  %v2066 = vsub.f32 0.0, %v2029
  %v2067 = vsub.f32 0.0, %v1934
  %v2068 = vsub.f32 0.0, %v2032
  %v2069 = vsub.f32 0.0, %v1936
  %v2070 = vsub.f32 0.0, %v2034
  %v2071 = vsub.f32 0.0, %v1939
  %v2072 = vsub.f32 0.0, %v2037
  %v2073 = vsub.f32 0.0, %v1941
  %v2074 = vsub.f32 0.0, %v2039
  %v2075 = vsub.f32 0.0, %v1944
  %v2076 = vsub.f32 0.0, %v2042
  %v2077 = vsub.f32 0.0, %v1946
  %v2078 = vsub.f32 0.0, %v2044
  %v2079 = vsub.f32 0.0, %v1949
  %v2080 = vsub.f32 0.0, %v2047
  %v2081 = vsub.f32 0.0, %v1951
  %v2082 = vsub.f32 0.0, %v2049
  %v2083 = vmul.f32 %v2051, 1.442695
  %v2084 = vpow.pop %v2083
  %v2085 = vmul.f32 %v2052, 1.442695
  %v2086 = vpow.pop %v2085
  %v2087 = vmul.f32 %v2053, 1.442695
  %v2088 = vpow.pop %v2087
  %v2089 = vmul.f32 %v2054, 1.442695
  %v2090 = vpow.pop %v2089
  %v2091 = vmul.f32 %v2055, 1.442695
  %v2092 = vpow.pop %v2091
  %v2093 = vmul.f32 %v2056, 1.442695
  %v2094 = vpow.pop %v2093
  %v2095 = vmul.f32 %v2057, 1.442695
  %v2096 = vpow.pop %v2095
  %v2097 = vmul.f32 %v2058, 1.442695
  %v2098 = vpow.pop %v2097
  %v2099 = vmul.f32 %v2059, 1.442695
  %v2100 = vpow.pop %v2099
  %v2101 = vmul.f32 %v2060, 1.442695
  %v2102 = vpow.pop %v2101
  %v2103 = vmul.f32 %v2061, 1.442695
  %v2104 = vpow.pop %v2103
  %v2105 = vmul.f32 %v2062, 1.442695
  %v2106 = vpow.pop %v2105
  %v2107 = vmul.f32 %v2063, 1.442695
  %v2108 = vpow.pop %v2107
  %v2109 = vmul.f32 %v2064, 1.442695
  %v2110 = vpow.pop %v2109
  %v2111 = vmul.f32 %v2065, 1.442695
  %v2112 = vpow.pop %v2111
  %v2113 = vmul.f32 %v2066, 1.442695
  %v2114 = vpow.pop %v2113
  %v2115 = vmul.f32 %v2067, 1.442695
  %v2116 = vpow.pop %v2115
  %v2117 = vmul.f32 %v2068, 1.442695
  %v2118 = vpow.pop %v2117
  %v2119 = vmul.f32 %v2069, 1.442695
  %v2120 = vpow.pop %v2119
  %v2121 = vmul.f32 %v2070, 1.442695
  %v2122 = vpow.pop %v2121
  %v2123 = vmul.f32 %v2071, 1.442695
  %v2124 = vpow.pop %v2123
  %v2125 = vmul.f32 %v2072, 1.442695
  %v2126 = vpow.pop %v2125
  %v2127 = vmul.f32 %v2073, 1.442695
  %v2128 = vpow.pop %v2127
  %v2129 = vmul.f32 %v2074, 1.442695
  %v2130 = vpow.pop %v2129
  %v2131 = vmul.f32 %v2075, 1.442695
  %v2132 = vpow.pop %v2131
  %v2133 = vmul.f32 %v2076, 1.442695
  %v2134 = vpow.pop %v2133
  %v2135 = vmul.f32 %v2077, 1.442695
  %v2136 = vpow.pop %v2135
  %v2137 = vmul.f32 %v2078, 1.442695
  %v2138 = vpow.pop %v2137
  %v2139 = vmul.f32 %v2079, 1.442695
  %v2140 = vpow.pop %v2139
  %v2141 = vmul.f32 %v2080, 1.442695
  %v2142 = vpow.pop %v2141
  %v2143 = vmul.f32 %v2081, 1.442695
  %v2144 = vpow.pop %v2143
  %v2145 = vmul.f32 %v2082, 1.442695
  %v2146 = vpow.pop %v2145
  %v2147 = vadd.f32 %v2084, 1.0
  %v2148 = vadd.f32 %v2086, 1.0
  %v2149 = vadd.f32 %v2088, 1.0
  %v2150 = vadd.f32 %v2090, 1.0
  %v2151 = vadd.f32 %v2092, 1.0
  %v2152 = vadd.f32 %v2094, 1.0
  %v2153 = vadd.f32 %v2096, 1.0
  %v2154 = vadd.f32 %v2098, 1.0
  %v2155 = vadd.f32 %v2100, 1.0
  %v2156 = vadd.f32 %v2102, 1.0
  %v2157 = vadd.f32 %v2104, 1.0
  %v2158 = vadd.f32 %v2106, 1.0
  %v2159 = vadd.f32 %v2108, 1.0
  %v2160 = vadd.f32 %v2110, 1.0
  %v2161 = vadd.f32 %v2112, 1.0
  %v2162 = vadd.f32 %v2114, 1.0
  %v2163 = vadd.f32 %v2116, 1.0
  %v2164 = vadd.f32 %v2118, 1.0
  %v2165 = vadd.f32 %v2120, 1.0
  %v2166 = vadd.f32 %v2122, 1.0
  %v2167 = vadd.f32 %v2124, 1.0
  %v2168 = vadd.f32 %v2126, 1.0
  %v2169 = vadd.f32 %v2128, 1.0
  %v2170 = vadd.f32 %v2130, 1.0
  %v2171 = vadd.f32 %v2132, 1.0
  %v2172 = vadd.f32 %v2134, 1.0
  %v2173 = vadd.f32 %v2136, 1.0
  %v2174 = vadd.f32 %v2138, 1.0
  %v2175 = vadd.f32 %v2140, 1.0
  %v2176 = vadd.f32 %v2142, 1.0
  %v2177 = vadd.f32 %v2144, 1.0
  %v2178 = vadd.f32 %v2146, 1.0
  %v2179 = vrcp.pop %v2147
  %v2180 = vrcp.pop %v2148
  %v2181 = vrcp.pop %v2149
  %v2182 = vrcp.pop %v2150
  %v2183 = vrcp.pop %v2151
  %v2184 = vrcp.pop %v2152
  %v2185 = vrcp.pop %v2153
  %v2186 = vrcp.pop %v2154
  %v2187 = vrcp.pop %v2155
  %v2188 = vrcp.pop %v2156
  %v2189 = vrcp.pop %v2157
  %v2190 = vrcp.pop %v2158
  %v2191 = vrcp.pop %v2159
  %v2192 = vrcp.pop %v2160
  %v2193 = vrcp.pop %v2161
  %v2194 = vrcp.pop %v2162
  %v2195 = vrcp.pop %v2163
  %v2196 = vrcp.pop %v2164
  %v2197 = vrcp.pop %v2165
  %v2198 = vrcp.pop %v2166
  %v2199 = vrcp.pop %v2167
  %v2200 = vrcp.pop %v2168
  %v2201 = vrcp.pop %v2169
  %v2202 = vrcp.pop %v2170
  %v2203 = vrcp.pop %v2171
  %v2204 = vrcp.pop %v2172
  %v2205 = vrcp.pop %v2173
  %v2206 = vrcp.pop %v2174
  %v2207 = vrcp.pop %v2175
  %v2208 = vrcp.pop %v2176
  %v2209 = vrcp.pop %v2177
  %v2210 = vrcp.pop %v2178
  %2211 = vst [vmem:[%s14] sm:$0xff] %v2179
  %2212 = vst [vmem:[%s14 + $0x8] sm:$0xff] %v2180
  %2213 = vst [vmem:[%s14 + $0x10] sm:$0xff] %v2181
  %2214 = vst [vmem:[%s14 + $0x18] sm:$0xff] %v2182
  %2215 = vst [vmem:[%s14 + $0x20] sm:$0xff] %v2183
  %2216 = vst [vmem:[%s14 + $0x28] sm:$0xff] %v2184
  %2217 = vst [vmem:[%s14 + $0x30] sm:$0xff] %v2185
  %2218 = vst [vmem:[%s14 + $0x38] sm:$0xff] %v2186
  %2219 = vst [vmem:[%s14 + $0x40] sm:$0xff] %v2187
  %2220 = vst [vmem:[%s14 + $0x48] sm:$0xff] %v2188
  %2221 = vst [vmem:[%s14 + $0x50] sm:$0xff] %v2189
  %2222 = vst [vmem:[%s14 + $0x58] sm:$0xff] %v2190
  %2223 = vst [vmem:[%s14 + $0x60] sm:$0xff] %v2191
  %2224 = vst [vmem:[%s14 + $0x68] sm:$0xff] %v2192
  %2225 = vst [vmem:[%s14 + $0x70] sm:$0xff] %v2193
  %2226 = vst [vmem:[%s14 + $0x78] sm:$0xff] %v2194
  %2227 = vst [vmem:[%s14 + $0x80] sm:$0xff] %v2195
  %2228 = vst [vmem:[%s14 + $0x88] sm:$0xff] %v2196
  %2229 = vst [vmem:[%s14 + $0x90] sm:$0xff] %v2197
  %2230 = vst [vmem:[%s14 + $0x98] sm:$0xff] %v2198
  %2231 = vst [vmem:[%s14 + $0xa0] sm:$0xff] %v2199
  %2232 = vst [vmem:[%s14 + $0xa8] sm:$0xff] %v2200
  %2233 = vst [vmem:[%s14 + $0xb0] sm:$0xff] %v2201
  %2234 = vst [vmem:[%s14 + $0xb8] sm:$0xff] %v2202
  %2235 = vst [vmem:[%s14 + $0xc0] sm:$0xff] %v2203
  %2236 = vst [vmem:[%s14 + $0xc8] sm:$0xff] %v2204
  %2237 = vst [vmem:[%s14 + $0xd0] sm:$0xff] %v2205
  %2238 = vst [vmem:[%s14 + $0xd8] sm:$0xff] %v2206
  %2239 = vst [vmem:[%s14 + $0xe0] sm:$0xff] %v2207
  %2240 = vst [vmem:[%s14 + $0xe8] sm:$0xff] %v2208
  %2241 = vst [vmem:[%s14 + $0xf0] sm:$0xff] %v2209
  %2242 = vst [vmem:[%s14 + $0xf8] sm:$0xff] %v2210
  // Predicated region
  $region58: #{vae_forward.1} parent=0 // pred_check
    _
  $region59: #{vae_forward.1} parent=0 // pred_check_branch
    %2244 = sbr.rel (0) target = $region61
  $region60: #{vae_forward.1} parent=0 // pred_region
    _
  $region61: #{vae_forward.1} parent=0 // pred_fallthru
    _
  // Predicated region
  $region62: #{vae_forward.1} parent=0 // pred_check
    _
  $region63: #{vae_forward.1} parent=0 // pred_check_branch
    %2246 = sbr.rel (0) target = $region65
  $region64: #{vae_forward.1} parent=0 // pred_region
    _
  $region65: #{vae_forward.1} parent=0 // pred_fallthru
    _
  // Predicated region
  $region66: #{vae_forward.1} parent=0 // pred_check
    _
  $region67: #{vae_forward.1} parent=0 // pred_check_branch
    %2248 = sbr.rel (0) target = $region69
  $region68: #{vae_forward.1} parent=0 // pred_region
    _
  $region69: #{vae_forward.1} parent=0 // pred_fallthru
    _
  // Predicated region
  $region70: #{vae_forward.1} parent=0 // pred_check
    _
  $region71: #{vae_forward.1} parent=0 // pred_check_branch
    %2250 = sbr.rel (0) target = $region73
  $region72: #{vae_forward.1} parent=0 // pred_region
    _
  $region73: #{vae_forward.1} parent=0 // pred_fallthru
    _

</llo_original>
